<compile_context>
chip_gen: v7x
topology: tpu7x:2x2x1
jax: 0.10.0
libtpu: 0.0.40
codegen_flags: <defaults>
</compile_context>

<pallas_src>
import functools

import jax
import jax.numpy as jnp
from jax.experimental import pallas as pl
from jax.experimental.pallas import tpu as pltpu


# ------------------------------------------------------------------ kernel ---

def _hocnnlb_kernel(p_ref, wm_ref, wc_ref, bc_ref, w1_ref, b1_ref, w2_ref,
                    b2_ref, o_ref, p1_s, conv_s, *, lp1_pad, lc, kc, lp2):
    """Whole HOCNNLB forward for one batch element, VMEM-resident throughout.

    p_ref  : (1, 2*3*lp1_pad, 16*(k-1)) bf16  window rows, ordered (strand, pool-phase r, t')
    wm_ref : (16*(k-1), Kn) bf16              markonv weight
    wc_ref : (kc, Kn, Co) bf16                conv weight, (dt, in, out)
    bc_ref : (1, Co) f32                      conv bias
    w1_ref : (lp2, Co, H1) f32                linear1 weight, (pooled-pos, channel, hidden)
    b1_ref : (1, H1) f32
    w2_ref : (outputdim, H1) f32              linear2 weight (transposed)
    b2_ref : (outputdim, 1) f32
    """
    rps = 3 * lp1_pad  # rows per strand

    # MarkonvR: one MXU matmul covers both strands (stacked along M).
    s = jnp.dot(p_ref[0], wm_ref[...],
                preferred_element_type=jnp.float32)              # (2*rps, Kn)
    # strand max + ReLU (all slice boundaries are multiples of 8 sublanes)
    m = jnp.maximum(jnp.maximum(s[:rps], s[rps:]), 0.0)          # (rps, Kn)

    # MaxPool1d(3): rows are pre-grouped by pool phase r -> elementwise max.
    p1 = jnp.maximum(jnp.maximum(m[:lp1_pad], m[lp1_pad:2 * lp1_pad]),
                     m[2 * lp1_pad:])                            # (lp1_pad, Kn)
    p1_s[...] = p1

    # Conv1d(Kn -> Co, kc) + bias + ReLU as a sum of kc shifted matmuls.
    co = bc_ref.shape[-1]
    acc = jnp.zeros((lc, co), jnp.float32)
    for dt in range(kc):
        win = p1_s[pl.ds(dt, lc), :].astype(jnp.bfloat16)        # (lc, Kn)
        acc = acc + jnp.dot(win, wc_ref[dt],
                            preferred_element_type=jnp.float32)
    conv_s[...] = jnp.maximum(acc + bc_ref[...], 0.0)            # (lc, Co)

    # MaxPool1d(3) + Flatten + Linear1 (dropouts are inference identities).
    h = b1_ref[...]                                              # (1, H1)
    for u in range(lp2):
        q = jnp.maximum(jnp.maximum(conv_s[pl.ds(3 * u, 1), :],
                                    conv_s[pl.ds(3 * u + 1, 1), :]),
                        conv_s[pl.ds(3 * u + 2, 1), :])          # (1, Co)
        h = h + jnp.dot(q, w1_ref[u], preferred_element_type=jnp.float32)

    # Linear2 + sigmoid on the VPU (no 16->1 MXU matmul / 1-lane detour).
    logits = jnp.sum(h * w2_ref[...], axis=-1, keepdims=True) + b2_ref[...]
    o_ref[0] = jax.nn.sigmoid(logits)                            # (outputdim, 1)


# -------------------------------------------------- wrapper (XLA-side prep) ---

def _pair_features_tl(x):
    # x: (B, 4, L) -> (B, L-1, 16); z[b, t, 4a+c] = x[b,a,t] * x[b,c,t+1]
    B, C, L = x.shape
    z = x[:, :, None, :-1] * x[:, None, :, 1:]                   # (B, 4, 4, L-1)
    return jnp.transpose(z.reshape(B, C * C, L - 1), (0, 2, 1))  # (B, L-1, 16)


def _window_rows(z, shifts, n_pos, pad_to):
    # z: (B, Lz, F). Builds im2col rows with static slices + concat (no gather),
    # row order (pool-phase r, pooled position t'), so raw position = 3*t' + r.
    chunks = [z[:, s0:s0 + n_pos, :] for s0 in shifts]           # (B, n_pos, F) each
    pat = jnp.concatenate(chunks, axis=-1)                       # (B, n_pos, F*len(shifts))
    B, _, FS = pat.shape
    lp = n_pos // 3
    pat = pat.reshape(B, lp, 3, FS)                              # p = 3t'+r -> (t', r)
    pat = jnp.transpose(pat, (0, 2, 1, 3))                       # (B, 3, lp, FS)
    return jnp.pad(pat, ((0, 0), (0, 0), (0, pad_to - lp), (0, 0)))


def hocnnlb_forward(x, params, kernel_size):
    B, _, L = x.shape
    k = kernel_size
    Kn = params["markonv_w"].shape[-1]
    K1 = 16 * (k - 1)

    Lm = L - k + 1                       # markonv output length
    Lp1 = Lm // 3                        # after pool1 (floor mode)
    n_pos = 3 * Lp1                      # markonv positions actually consumed
    Lp1_pad = ((Lp1 + 7) // 8) * 8       # pad pooled-position axis to a sublane multiple
    kc = params["conv_w"].shape[-1]      # conv kernel (10)
    Co = params["conv_w"].shape[0]       # conv out channels (64)
    Lc = Lp1 - kc + 1                    # conv output length
    Lp2 = Lc // 3                        # after pool2
    H1 = params["lin1_w"].shape[1]
    outputdim = params["lin2_w"].shape[-1]
    assert Co * Lp2 == params["lin1_w"].shape[0], "Linear(384,16) requires 64*Lp2 == 384"

    # Pair features for both strands (tiny elementwise ops, no gather).
    # NOTE: x[:, ::-1, ::-1] assumes one-hot channel order A,C,G,T so that
    # reversing channels is the complement map.
    zf = _pair_features_tl(x)                                    # (B, L-1, 16)
    zr_rev = _pair_features_tl(x[:, ::-1, ::-1])[:, ::-1, :]     # RC strand, re-aligned

    # Window rows: forward strand uses offsets 0..k-2; RC strand uses them
    # reversed so the same (un-flipped) weight matrix applies to both strands.
    fwd_shifts = list(range(k - 1))
    rc_shifts = list(reversed(fwd_shifts))
    p_fwd = _window_rows(zf, fwd_shifts, n_pos, Lp1_pad)         # (B, 3, Lp1_pad, K1)
    p_rc = _window_rows(zr_rev, rc_shifts, n_pos, Lp1_pad)
    rows = 2 * 3 * Lp1_pad
    p_all = (jnp.concatenate([p_fwd, p_rc], axis=1)
             .reshape(B, rows, K1).astype(jnp.bfloat16))         # (B, rows, K1)

    # Weights, re-laid-out once on the host side of the call.
    wm = params["markonv_w"].reshape(K1, Kn).astype(jnp.bfloat16)          # (K1, Kn)
    wc = jnp.transpose(params["conv_w"], (2, 1, 0)).astype(jnp.bfloat16)   # (kc, Kn, Co)
    bc = params["conv_b"].reshape(1, Co)
    w1 = jnp.transpose(params["lin1_w"].reshape(Co, Lp2, H1), (1, 0, 2))   # (Lp2, Co, H1)
    b1 = params["lin1_b"].reshape(1, H1)
    w2 = params["lin2_w"].T                                                # (outputdim, H1)
    b2 = params["lin2_b"].reshape(outputdim, 1)

    kern = functools.partial(_hocnnlb_kernel, lp1_pad=Lp1_pad, lc=Lc, kc=kc, lp2=Lp2)

    flops = 2 * B * (rows * K1 * Kn + Lc * Kn * Co * kc + Lp2 * Co * H1 + H1 * outputdim)
    bytes_accessed = int(p_all.size * 2 + wm.size * 2 + wc.size * 2
                         + (bc.size + w1.size + b1.size + w2.size + b2.size) * 4
                         + B * outputdim * 4)

    out = pl.pallas_call(
        kern,
        out_shape=jax.ShapeDtypeStruct((B, outputdim, 1), jnp.float32),
        grid=(B,),
        in_specs=[
            pl.BlockSpec((1, rows, K1), lambda b: (b, 0, 0)),
            pl.BlockSpec((K1, Kn), lambda b: (0, 0)),
            pl.BlockSpec((kc, Kn, Co), lambda b: (0, 0, 0)),
            pl.BlockSpec((1, Co), lambda b: (0, 0)),
            pl.BlockSpec((Lp2, Co, H1), lambda b: (0, 0, 0)),
            pl.BlockSpec((1, H1), lambda b: (0, 0)),
            pl.BlockSpec((outputdim, H1), lambda b: (0, 0)),
            pl.BlockSpec((outputdim, 1), lambda b: (0, 0)),
        ],
        out_specs=pl.BlockSpec((1, outputdim, 1), lambda b: (b, 0, 0)),
        scratch_shapes=[
            pltpu.VMEM((Lp1_pad, Kn), jnp.float32),   # pooled markonv output
            pltpu.VMEM((Lc, Co), jnp.float32),        # conv output
        ],
        compiler_params=pltpu.CompilerParams(dimension_semantics=("parallel",)),
        cost_estimate=pl.CostEstimate(flops=flops,
                                      transcendentals=B * outputdim,
                                      bytes_accessed=bytes_accessed),
    )(p_all, wm, wc, bc, w1, b1, w2, b2)

    return jnp.squeeze(out[:, :, 0])                 # torch .squeeze()


# --------------------------------------------------------------- parameters ---

def init_params(key, kernel_size, number_of_kernel, outputdim):
    ks = jax.random.split(key, 7)

    def u(k, shape, scale):
        return jax.random.uniform(k, shape, jnp.float32, -scale, scale)

    return {
        # MarkonvR transition kernels: (k-1, 4, 4, Kn)
        "markonv_w": jax.random.uniform(
            ks[0], (kernel_size - 1, 4, 4, number_of_kernel), jnp.float32),
        "conv_w": u(ks[1], (64, number_of_kernel, 10), 1.0 / (number_of_kernel * 10) ** 0.5),
        "conv_b": u(ks[2], (64,), 1.0 / (number_of_kernel * 10) ** 0.5),
        "lin1_w": u(ks[3], (384, 16), 1.0 / 384 ** 0.5),
        "lin1_b": u(ks[4], (16,), 1.0 / 384 ** 0.5),
        "lin2_w": u(ks[5], (16, outputdim), 1.0 / 16 ** 0.5),
        "lin2_b": u(ks[6], (outputdim,), 1.0 / 16 ** 0.5),
    }


if __name__ == "__main__":
    kernel_size, number_of_kernel, outputdim = 13, 32, 1
    B, L = 2, 101  # L=101, k=13 -> flatten dim 64*6 = 384, matching Linear(384, 16)

    key = jax.random.PRNGKey(0)
    k_par, k_seq = jax.random.split(key)
    params = init_params(k_par, kernel_size, number_of_kernel, outputdim)

    # one-hot DNA input, channels-first (B, 4, L)
    bases = jax.random.randint(k_seq, (B, L), 0, 4)
    x = jnp.transpose(jax.nn.one_hot(bases, 4, dtype=jnp.float32), (0, 2, 1))

    fwd = jax.jit(functools.partial(hocnnlb_forward, kernel_size=kernel_size))
    out = fwd(x, params)
    jax.block_until_ready(out)
    assert out.shape == (B,), out.shape
    assert bool(jnp.all((out >= 0.0) & (out <= 1.0)))
    print("KERNEL_OK")
</pallas_src>

<mosaic_0001>
module attributes {stable_mosaic.version = 11 : i64} {
  func.func @_hocnnlb_kernel(%arg0: i32, %arg1: memref<1x192x192xbf16, #tpu.memory_space<vmem>>, %arg2: memref<192x32xbf16, #tpu.memory_space<vmem>>, %arg3: memref<10x32x64xbf16, #tpu.memory_space<vmem>>, %arg4: memref<1x64xf32, #tpu.memory_space<vmem>>, %arg5: memref<6x64x16xf32, #tpu.memory_space<vmem>>, %arg6: memref<1x16xf32, #tpu.memory_space<vmem>>, %arg7: memref<1x16xf32, #tpu.memory_space<vmem>>, %arg8: memref<1x1xf32, #tpu.memory_space<vmem>>, %arg9: memref<1x1x1xf32, #tpu.memory_space<vmem>>, %arg10: memref<32x32xf32, #tpu.memory_space<vmem>>, %arg11: memref<20x64xf32, #tpu.memory_space<vmem>>) attributes {dimension_semantics = [#tpu.dimension_semantics<parallel>], iteration_bounds = array<i64: 2>, scalar_prefetch = 0 : i64, scratch_operands = 2 : i64, tpu.core_type = #tpu.core_type<tc>, window_params = [{transform_indices = @transform_0, window_bounds = array<i64: 1, 192, 192>}, {pipeline_mode = #tpu.pipeline_mode<synchronous>, transform_indices = @transform_1, window_bounds = array<i64: 192, 32>}, {pipeline_mode = #tpu.pipeline_mode<synchronous>, transform_indices = @transform_2, window_bounds = array<i64: 10, 32, 64>}, {pipeline_mode = #tpu.pipeline_mode<synchronous>, transform_indices = @transform_3, window_bounds = array<i64: 1, 64>}, {pipeline_mode = #tpu.pipeline_mode<synchronous>, transform_indices = @transform_4, window_bounds = array<i64: 6, 64, 16>}, {pipeline_mode = #tpu.pipeline_mode<synchronous>, transform_indices = @transform_5, window_bounds = array<i64: 1, 16>}, {pipeline_mode = #tpu.pipeline_mode<synchronous>, transform_indices = @transform_6, window_bounds = array<i64: 1, 16>}, {pipeline_mode = #tpu.pipeline_mode<synchronous>, transform_indices = @transform_7, window_bounds = array<i64: 1, 1>}, {transform_indices = @transform_8, window_bounds = array<i64: 1, 1, 1>}]} {
    %c0 = arith.constant 0 : index
    %c0_0 = arith.constant 0 : index
    %c0_1 = arith.constant 0 : index
    %0 = vector.load %arg1[%c0, %c0_0, %c0_1] : memref<1x192x192xbf16, #tpu.memory_space<vmem>>, vector<1x192x192xbf16>
    %1 = vector.shape_cast %0 : vector<1x192x192xbf16> to vector<192x192xbf16>
    %c0_2 = arith.constant 0 : index
    %c0_3 = arith.constant 0 : index
    %2 = vector.load %arg2[%c0_2, %c0_3] : memref<192x32xbf16, #tpu.memory_space<vmem>>, vector<192x32xbf16>
    %cst = arith.constant dense<0.000000e+00> : vector<192x32xf32>
    %3 = tpu.matmul %1, %2, %cst {dimension_numbers = #tpu.dot_dimension_numbers<[1], [0], [0], [1], [0, 0, 1, 1], [], []>} : vector<192x192xbf16>, vector<192x32xbf16>, vector<192x32xf32> -> vector<192x32xf32>
    %4 = vector.extract_strided_slice %3 {offsets = [0, 0], sizes = [96, 32], strides = [1, 1]} : vector<192x32xf32> to vector<96x32xf32>
    %5 = vector.extract_strided_slice %3 {offsets = [96, 0], sizes = [96, 32], strides = [1, 1]} : vector<192x32xf32> to vector<96x32xf32>
    %6 = arith.maximumf %4, %5 : vector<96x32xf32>
    %cst_4 = arith.constant 0.000000e+00 : f32
    %7 = vector.broadcast %cst_4 : f32 to vector<96x32xf32>
    %8 = arith.maximumf %6, %7 : vector<96x32xf32>
    %9 = vector.extract_strided_slice %8 {offsets = [0, 0], sizes = [32, 32], strides = [1, 1]} : vector<96x32xf32> to vector<32x32xf32>
    %10 = vector.extract_strided_slice %8 {offsets = [32, 0], sizes = [32, 32], strides = [1, 1]} : vector<96x32xf32> to vector<32x32xf32>
    %11 = arith.maximumf %9, %10 : vector<32x32xf32>
    %12 = vector.extract_strided_slice %8 {offsets = [64, 0], sizes = [32, 32], strides = [1, 1]} : vector<96x32xf32> to vector<32x32xf32>
    %13 = arith.maximumf %11, %12 : vector<32x32xf32>
    %c0_5 = arith.constant 0 : index
    %c0_6 = arith.constant 0 : index
    %14 = vector.load %arg10[%c0_5, %c0_6] : memref<32x32xf32, #tpu.memory_space<vmem>>, vector<32x32xf32>
    tpu.vector_store %arg10[%c0_5, %c0_6], %13 {strides = array<i32>} : memref<32x32xf32, #tpu.memory_space<vmem>>, vector<32x32xf32>,
    %cst_7 = arith.constant 0.000000e+00 : f32
    %15 = vector.broadcast %cst_7 : f32 to vector<20x64xf32>
    %c0_8 = arith.constant 0 : index
    %c0_9 = arith.constant 0 : index
    %16 = vector.load %arg10[%c0_8, %c0_9] : memref<32x32xf32, #tpu.memory_space<vmem>>, vector<20x32xf32>
    %17 = arith.truncf %16 : vector<20x32xf32> to vector<20x32xbf16>
    %c0_10 = arith.constant 0 : index
    %c0_11 = arith.constant 0 : index
    %c0_12 = arith.constant 0 : index
    %18 = vector.load %arg3[%c0_10, %c0_11, %c0_12] : memref<10x32x64xbf16, #tpu.memory_space<vmem>>, vector<1x32x64xbf16>
    %19 = vector.shape_cast %18 : vector<1x32x64xbf16> to vector<32x64xbf16>
    %cst_13 = arith.constant dense<0.000000e+00> : vector<20x64xf32>
    %20 = tpu.matmul %17, %19, %cst_13 {dimension_numbers = #tpu.dot_dimension_numbers<[1], [0], [0], [1], [0, 0, 1, 1], [], []>} : vector<20x32xbf16>, vector<32x64xbf16>, vector<20x64xf32> -> vector<20x64xf32>
    %21 = arith.addf %15, %20 : vector<20x64xf32>
    %c1 = arith.constant 1 : index
    %c0_14 = arith.constant 0 : index
    %22 = vector.load %arg10[%c1, %c0_14] : memref<32x32xf32, #tpu.memory_space<vmem>>, vector<20x32xf32>
    %23 = arith.truncf %22 : vector<20x32xf32> to vector<20x32xbf16>
    %c1_15 = arith.constant 1 : index
    %c0_16 = arith.constant 0 : index
    %c0_17 = arith.constant 0 : index
    %24 = vector.load %arg3[%c1_15, %c0_16, %c0_17] : memref<10x32x64xbf16, #tpu.memory_space<vmem>>, vector<1x32x64xbf16>
    %25 = vector.shape_cast %24 : vector<1x32x64xbf16> to vector<32x64xbf16>
    %cst_18 = arith.constant dense<0.000000e+00> : vector<20x64xf32>
    %26 = tpu.matmul %23, %25, %cst_18 {dimension_numbers = #tpu.dot_dimension_numbers<[1], [0], [0], [1], [0, 0, 1, 1], [], []>} : vector<20x32xbf16>, vector<32x64xbf16>, vector<20x64xf32> -> vector<20x64xf32>
    %27 = arith.addf %21, %26 : vector<20x64xf32>
    %c2 = arith.constant 2 : index
    %c0_19 = arith.constant 0 : index
    %28 = vector.load %arg10[%c2, %c0_19] : memref<32x32xf32, #tpu.memory_space<vmem>>, vector<20x32xf32>
    %29 = arith.truncf %28 : vector<20x32xf32> to vector<20x32xbf16>
    %c2_20 = arith.constant 2 : index
    %c0_21 = arith.constant 0 : index
    %c0_22 = arith.constant 0 : index
    %30 = vector.load %arg3[%c2_20, %c0_21, %c0_22] : memref<10x32x64xbf16, #tpu.memory_space<vmem>>, vector<1x32x64xbf16>
    %31 = vector.shape_cast %30 : vector<1x32x64xbf16> to vector<32x64xbf16>
    %cst_23 = arith.constant dense<0.000000e+00> : vector<20x64xf32>
    %32 = tpu.matmul %29, %31, %cst_23 {dimension_numbers = #tpu.dot_dimension_numbers<[1], [0], [0], [1], [0, 0, 1, 1], [], []>} : vector<20x32xbf16>, vector<32x64xbf16>, vector<20x64xf32> -> vector<20x64xf32>
    %33 = arith.addf %27, %32 : vector<20x64xf32>
    %c3 = arith.constant 3 : index
    %c0_24 = arith.constant 0 : index
    %34 = vector.load %arg10[%c3, %c0_24] : memref<32x32xf32, #tpu.memory_space<vmem>>, vector<20x32xf32>
    %35 = arith.truncf %34 : vector<20x32xf32> to vector<20x32xbf16>
    %c3_25 = arith.constant 3 : index
    %c0_26 = arith.constant 0 : index
    %c0_27 = arith.constant 0 : index
    %36 = vector.load %arg3[%c3_25, %c0_26, %c0_27] : memref<10x32x64xbf16, #tpu.memory_space<vmem>>, vector<1x32x64xbf16>
    %37 = vector.shape_cast %36 : vector<1x32x64xbf16> to vector<32x64xbf16>
    %cst_28 = arith.constant dense<0.000000e+00> : vector<20x64xf32>
    %38 = tpu.matmul %35, %37, %cst_28 {dimension_numbers = #tpu.dot_dimension_numbers<[1], [0], [0], [1], [0, 0, 1, 1], [], []>} : vector<20x32xbf16>, vector<32x64xbf16>, vector<20x64xf32> -> vector<20x64xf32>
    %39 = arith.addf %33, %38 : vector<20x64xf32>
    %c4 = arith.constant 4 : index
    %c0_29 = arith.constant 0 : index
    %40 = vector.load %arg10[%c4, %c0_29] : memref<32x32xf32, #tpu.memory_space<vmem>>, vector<20x32xf32>
    %41 = arith.truncf %40 : vector<20x32xf32> to vector<20x32xbf16>
    %c4_30 = arith.constant 4 : index
    %c0_31 = arith.constant 0 : index
    %c0_32 = arith.constant 0 : index
    %42 = vector.load %arg3[%c4_30, %c0_31, %c0_32] : memref<10x32x64xbf16, #tpu.memory_space<vmem>>, vector<1x32x64xbf16>
    %43 = vector.shape_cast %42 : vector<1x32x64xbf16> to vector<32x64xbf16>
    %cst_33 = arith.constant dense<0.000000e+00> : vector<20x64xf32>
    %44 = tpu.matmul %41, %43, %cst_33 {dimension_numbers = #tpu.dot_dimension_numbers<[1], [0], [0], [1], [0, 0, 1, 1], [], []>} : vector<20x32xbf16>, vector<32x64xbf16>, vector<20x64xf32> -> vector<20x64xf32>
    %45 = arith.addf %39, %44 : vector<20x64xf32>
    %c5 = arith.constant 5 : index
    %c0_34 = arith.constant 0 : index
    %46 = vector.load %arg10[%c5, %c0_34] : memref<32x32xf32, #tpu.memory_space<vmem>>, vector<20x32xf32>
    %47 = arith.truncf %46 : vector<20x32xf32> to vector<20x32xbf16>
    %c5_35 = arith.constant 5 : index
    %c0_36 = arith.constant 0 : index
    %c0_37 = arith.constant 0 : index
    %48 = vector.load %arg3[%c5_35, %c0_36, %c0_37] : memref<10x32x64xbf16, #tpu.memory_space<vmem>>, vector<1x32x64xbf16>
    %49 = vector.shape_cast %48 : vector<1x32x64xbf16> to vector<32x64xbf16>
    %cst_38 = arith.constant dense<0.000000e+00> : vector<20x64xf32>
    %50 = tpu.matmul %47, %49, %cst_38 {dimension_numbers = #tpu.dot_dimension_numbers<[1], [0], [0], [1], [0, 0, 1, 1], [], []>} : vector<20x32xbf16>, vector<32x64xbf16>, vector<20x64xf32> -> vector<20x64xf32>
    %51 = arith.addf %45, %50 : vector<20x64xf32>
    %c6 = arith.constant 6 : index
    %c0_39 = arith.constant 0 : index
    %52 = vector.load %arg10[%c6, %c0_39] : memref<32x32xf32, #tpu.memory_space<vmem>>, vector<20x32xf32>
    %53 = arith.truncf %52 : vector<20x32xf32> to vector<20x32xbf16>
    %c6_40 = arith.constant 6 : index
    %c0_41 = arith.constant 0 : index
    %c0_42 = arith.constant 0 : index
    %54 = vector.load %arg3[%c6_40, %c0_41, %c0_42] : memref<10x32x64xbf16, #tpu.memory_space<vmem>>, vector<1x32x64xbf16>
    %55 = vector.shape_cast %54 : vector<1x32x64xbf16> to vector<32x64xbf16>
    %cst_43 = arith.constant dense<0.000000e+00> : vector<20x64xf32>
    %56 = tpu.matmul %53, %55, %cst_43 {dimension_numbers = #tpu.dot_dimension_numbers<[1], [0], [0], [1], [0, 0, 1, 1], [], []>} : vector<20x32xbf16>, vector<32x64xbf16>, vector<20x64xf32> -> vector<20x64xf32>
    %57 = arith.addf %51, %56 : vector<20x64xf32>
    %c7 = arith.constant 7 : index
    %c0_44 = arith.constant 0 : index
    %58 = vector.load %arg10[%c7, %c0_44] : memref<32x32xf32, #tpu.memory_space<vmem>>, vector<20x32xf32>
    %59 = arith.truncf %58 : vector<20x32xf32> to vector<20x32xbf16>
    %c7_45 = arith.constant 7 : index
    %c0_46 = arith.constant 0 : index
    %c0_47 = arith.constant 0 : index
    %60 = vector.load %arg3[%c7_45, %c0_46, %c0_47] : memref<10x32x64xbf16, #tpu.memory_space<vmem>>, vector<1x32x64xbf16>
    %61 = vector.shape_cast %60 : vector<1x32x64xbf16> to vector<32x64xbf16>
    %cst_48 = arith.constant dense<0.000000e+00> : vector<20x64xf32>
    %62 = tpu.matmul %59, %61, %cst_48 {dimension_numbers = #tpu.dot_dimension_numbers<[1], [0], [0], [1], [0, 0, 1, 1], [], []>} : vector<20x32xbf16>, vector<32x64xbf16>, vector<20x64xf32> -> vector<20x64xf32>
    %63 = arith.addf %57, %62 : vector<20x64xf32>
    %c8 = arith.constant 8 : index
    %c0_49 = arith.constant 0 : index
    %64 = vector.load %arg10[%c8, %c0_49] : memref<32x32xf32, #tpu.memory_space<vmem>>, vector<20x32xf32>
    %65 = arith.truncf %64 : vector<20x32xf32> to vector<20x32xbf16>
    %c8_50 = arith.constant 8 : index
    %c0_51 = arith.constant 0 : index
    %c0_52 = arith.constant 0 : index
    %66 = vector.load %arg3[%c8_50, %c0_51, %c0_52] : memref<10x32x64xbf16, #tpu.memory_space<vmem>>, vector<1x32x64xbf16>
    %67 = vector.shape_cast %66 : vector<1x32x64xbf16> to vector<32x64xbf16>
    %cst_53 = arith.constant dense<0.000000e+00> : vector<20x64xf32>
    %68 = tpu.matmul %65, %67, %cst_53 {dimension_numbers = #tpu.dot_dimension_numbers<[1], [0], [0], [1], [0, 0, 1, 1], [], []>} : vector<20x32xbf16>, vector<32x64xbf16>, vector<20x64xf32> -> vector<20x64xf32>
    %69 = arith.addf %63, %68 : vector<20x64xf32>
    %c9 = arith.constant 9 : index
    %c0_54 = arith.constant 0 : index
    %70 = vector.load %arg10[%c9, %c0_54] : memref<32x32xf32, #tpu.memory_space<vmem>>, vector<20x32xf32>
    %71 = arith.truncf %70 : vector<20x32xf32> to vector<20x32xbf16>
    %c9_55 = arith.constant 9 : index
    %c0_56 = arith.constant 0 : index
    %c0_57 = arith.constant 0 : index
    %72 = vector.load %arg3[%c9_55, %c0_56, %c0_57] : memref<10x32x64xbf16, #tpu.memory_space<vmem>>, vector<1x32x64xbf16>
    %73 = vector.shape_cast %72 : vector<1x32x64xbf16> to vector<32x64xbf16>
    %cst_58 = arith.constant dense<0.000000e+00> : vector<20x64xf32>
    %74 = tpu.matmul %71, %73, %cst_58 {dimension_numbers = #tpu.dot_dimension_numbers<[1], [0], [0], [1], [0, 0, 1, 1], [], []>} : vector<20x32xbf16>, vector<32x64xbf16>, vector<20x64xf32> -> vector<20x64xf32>
    %75 = arith.addf %69, %74 : vector<20x64xf32>
    %c0_59 = arith.constant 0 : index
    %c0_60 = arith.constant 0 : index
    %76 = vector.load %arg4[%c0_59, %c0_60] : memref<1x64xf32, #tpu.memory_space<vmem>>, vector<1x64xf32>
    %77 = vector.broadcast %76 : vector<1x64xf32> to vector<20x64xf32>
    %78 = arith.addf %75, %77 : vector<20x64xf32>
    %cst_61 = arith.constant 0.000000e+00 : f32
    %79 = vector.broadcast %cst_61 : f32 to vector<20x64xf32>
    %80 = arith.maximumf %78, %79 : vector<20x64xf32>
    %c0_62 = arith.constant 0 : index
    %c0_63 = arith.constant 0 : index
    %81 = vector.load %arg11[%c0_62, %c0_63] : memref<20x64xf32, #tpu.memory_space<vmem>>, vector<20x64xf32>
    tpu.vector_store %arg11[%c0_62, %c0_63], %80 {strides = array<i32>} : memref<20x64xf32, #tpu.memory_space<vmem>>, vector<20x64xf32>,
    %c0_64 = arith.constant 0 : index
    %c0_65 = arith.constant 0 : index
    %82 = vector.load %arg6[%c0_64, %c0_65] : memref<1x16xf32, #tpu.memory_space<vmem>>, vector<1x16xf32>
    %c0_66 = arith.constant 0 : index
    %c0_67 = arith.constant 0 : index
    %83 = vector.load %arg11[%c0_66, %c0_67] : memref<20x64xf32, #tpu.memory_space<vmem>>, vector<1x64xf32>
    %c1_68 = arith.constant 1 : index
    %c0_69 = arith.constant 0 : index
    %84 = vector.load %arg11[%c1_68, %c0_69] : memref<20x64xf32, #tpu.memory_space<vmem>>, vector<1x64xf32>
    %85 = arith.maximumf %83, %84 : vector<1x64xf32>
    %c2_70 = arith.constant 2 : index
    %c0_71 = arith.constant 0 : index
    %86 = vector.load %arg11[%c2_70, %c0_71] : memref<20x64xf32, #tpu.memory_space<vmem>>, vector<1x64xf32>
    %87 = arith.maximumf %85, %86 : vector<1x64xf32>
    %c0_72 = arith.constant 0 : index
    %c0_73 = arith.constant 0 : index
    %c0_74 = arith.constant 0 : index
    %88 = vector.load %arg5[%c0_72, %c0_73, %c0_74] : memref<6x64x16xf32, #tpu.memory_space<vmem>>, vector<1x64x16xf32>
    %89 = vector.shape_cast %88 : vector<1x64x16xf32> to vector<64x16xf32>
    %cst_75 = arith.constant dense<0.000000e+00> : vector<1x16xf32>
    %90 = tpu.matmul %87, %89, %cst_75 {dimension_numbers = #tpu.dot_dimension_numbers<[1], [0], [0], [1], [0, 0, 1, 1], [], []>} : vector<1x64xf32>, vector<64x16xf32>, vector<1x16xf32> -> vector<1x16xf32>
    %91 = arith.addf %82, %90 : vector<1x16xf32>
    %c3_76 = arith.constant 3 : index
    %c0_77 = arith.constant 0 : index
    %92 = vector.load %arg11[%c3_76, %c0_77] : memref<20x64xf32, #tpu.memory_space<vmem>>, vector<1x64xf32>
    %c4_78 = arith.constant 4 : index
    %c0_79 = arith.constant 0 : index
    %93 = vector.load %arg11[%c4_78, %c0_79] : memref<20x64xf32, #tpu.memory_space<vmem>>, vector<1x64xf32>
    %94 = arith.maximumf %92, %93 : vector<1x64xf32>
    %c5_80 = arith.constant 5 : index
    %c0_81 = arith.constant 0 : index
    %95 = vector.load %arg11[%c5_80, %c0_81] : memref<20x64xf32, #tpu.memory_space<vmem>>, vector<1x64xf32>
    %96 = arith.maximumf %94, %95 : vector<1x64xf32>
    %c1_82 = arith.constant 1 : index
    %c0_83 = arith.constant 0 : index
    %c0_84 = arith.constant 0 : index
    %97 = vector.load %arg5[%c1_82, %c0_83, %c0_84] : memref<6x64x16xf32, #tpu.memory_space<vmem>>, vector<1x64x16xf32>
    %98 = vector.shape_cast %97 : vector<1x64x16xf32> to vector<64x16xf32>
    %cst_85 = arith.constant dense<0.000000e+00> : vector<1x16xf32>
    %99 = tpu.matmul %96, %98, %cst_85 {dimension_numbers = #tpu.dot_dimension_numbers<[1], [0], [0], [1], [0, 0, 1, 1], [], []>} : vector<1x64xf32>, vector<64x16xf32>, vector<1x16xf32> -> vector<1x16xf32>
    %100 = arith.addf %91, %99 : vector<1x16xf32>
    %c6_86 = arith.constant 6 : index
    %c0_87 = arith.constant 0 : index
    %101 = vector.load %arg11[%c6_86, %c0_87] : memref<20x64xf32, #tpu.memory_space<vmem>>, vector<1x64xf32>
    %c7_88 = arith.constant 7 : index
    %c0_89 = arith.constant 0 : index
    %102 = vector.load %arg11[%c7_88, %c0_89] : memref<20x64xf32, #tpu.memory_space<vmem>>, vector<1x64xf32>
    %103 = arith.maximumf %101, %102 : vector<1x64xf32>
    %c8_90 = arith.constant 8 : index
    %c0_91 = arith.constant 0 : index
    %104 = vector.load %arg11[%c8_90, %c0_91] : memref<20x64xf32, #tpu.memory_space<vmem>>, vector<1x64xf32>
    %105 = arith.maximumf %103, %104 : vector<1x64xf32>
    %c2_92 = arith.constant 2 : index
    %c0_93 = arith.constant 0 : index
    %c0_94 = arith.constant 0 : index
    %106 = vector.load %arg5[%c2_92, %c0_93, %c0_94] : memref<6x64x16xf32, #tpu.memory_space<vmem>>, vector<1x64x16xf32>
    %107 = vector.shape_cast %106 : vector<1x64x16xf32> to vector<64x16xf32>
    %cst_95 = arith.constant dense<0.000000e+00> : vector<1x16xf32>
    %108 = tpu.matmul %105, %107, %cst_95 {dimension_numbers = #tpu.dot_dimension_numbers<[1], [0], [0], [1], [0, 0, 1, 1], [], []>} : vector<1x64xf32>, vector<64x16xf32>, vector<1x16xf32> -> vector<1x16xf32>
    %109 = arith.addf %100, %108 : vector<1x16xf32>
    %c9_96 = arith.constant 9 : index
    %c0_97 = arith.constant 0 : index
    %110 = vector.load %arg11[%c9_96, %c0_97] : memref<20x64xf32, #tpu.memory_space<vmem>>, vector<1x64xf32>
    %c10 = arith.constant 10 : index
    %c0_98 = arith.constant 0 : index
    %111 = vector.load %arg11[%c10, %c0_98] : memref<20x64xf32, #tpu.memory_space<vmem>>, vector<1x64xf32>
    %112 = arith.maximumf %110, %111 : vector<1x64xf32>
    %c11 = arith.constant 11 : index
    %c0_99 = arith.constant 0 : index
    %113 = vector.load %arg11[%c11, %c0_99] : memref<20x64xf32, #tpu.memory_space<vmem>>, vector<1x64xf32>
    %114 = arith.maximumf %112, %113 : vector<1x64xf32>
    %c3_100 = arith.constant 3 : index
    %c0_101 = arith.constant 0 : index
    %c0_102 = arith.constant 0 : index
    %115 = vector.load %arg5[%c3_100, %c0_101, %c0_102] : memref<6x64x16xf32, #tpu.memory_space<vmem>>, vector<1x64x16xf32>
    %116 = vector.shape_cast %115 : vector<1x64x16xf32> to vector<64x16xf32>
    %cst_103 = arith.constant dense<0.000000e+00> : vector<1x16xf32>
    %117 = tpu.matmul %114, %116, %cst_103 {dimension_numbers = #tpu.dot_dimension_numbers<[1], [0], [0], [1], [0, 0, 1, 1], [], []>} : vector<1x64xf32>, vector<64x16xf32>, vector<1x16xf32> -> vector<1x16xf32>
    %118 = arith.addf %109, %117 : vector<1x16xf32>
    %c12 = arith.constant 12 : index
    %c0_104 = arith.constant 0 : index
    %119 = vector.load %arg11[%c12, %c0_104] : memref<20x64xf32, #tpu.memory_space<vmem>>, vector<1x64xf32>
    %c13 = arith.constant 13 : index
    %c0_105 = arith.constant 0 : index
    %120 = vector.load %arg11[%c13, %c0_105] : memref<20x64xf32, #tpu.memory_space<vmem>>, vector<1x64xf32>
    %121 = arith.maximumf %119, %120 : vector<1x64xf32>
    %c14 = arith.constant 14 : index
    %c0_106 = arith.constant 0 : index
    %122 = vector.load %arg11[%c14, %c0_106] : memref<20x64xf32, #tpu.memory_space<vmem>>, vector<1x64xf32>
    %123 = arith.maximumf %121, %122 : vector<1x64xf32>
    %c4_107 = arith.constant 4 : index
    %c0_108 = arith.constant 0 : index
    %c0_109 = arith.constant 0 : index
    %124 = vector.load %arg5[%c4_107, %c0_108, %c0_109] : memref<6x64x16xf32, #tpu.memory_space<vmem>>, vector<1x64x16xf32>
    %125 = vector.shape_cast %124 : vector<1x64x16xf32> to vector<64x16xf32>
    %cst_110 = arith.constant dense<0.000000e+00> : vector<1x16xf32>
    %126 = tpu.matmul %123, %125, %cst_110 {dimension_numbers = #tpu.dot_dimension_numbers<[1], [0], [0], [1], [0, 0, 1, 1], [], []>} : vector<1x64xf32>, vector<64x16xf32>, vector<1x16xf32> -> vector<1x16xf32>
    %127 = arith.addf %118, %126 : vector<1x16xf32>
    %c15 = arith.constant 15 : index
    %c0_111 = arith.constant 0 : index
    %128 = vector.load %arg11[%c15, %c0_111] : memref<20x64xf32, #tpu.memory_space<vmem>>, vector<1x64xf32>
    %c16 = arith.constant 16 : index
    %c0_112 = arith.constant 0 : index
    %129 = vector.load %arg11[%c16, %c0_112] : memref<20x64xf32, #tpu.memory_space<vmem>>, vector<1x64xf32>
    %130 = arith.maximumf %128, %129 : vector<1x64xf32>
    %c17 = arith.constant 17 : index
    %c0_113 = arith.constant 0 : index
    %131 = vector.load %arg11[%c17, %c0_113] : memref<20x64xf32, #tpu.memory_space<vmem>>, vector<1x64xf32>
    %132 = arith.maximumf %130, %131 : vector<1x64xf32>
    %c5_114 = arith.constant 5 : index
    %c0_115 = arith.constant 0 : index
    %c0_116 = arith.constant 0 : index
    %133 = vector.load %arg5[%c5_114, %c0_115, %c0_116] : memref<6x64x16xf32, #tpu.memory_space<vmem>>, vector<1x64x16xf32>
    %134 = vector.shape_cast %133 : vector<1x64x16xf32> to vector<64x16xf32>
    %cst_117 = arith.constant dense<0.000000e+00> : vector<1x16xf32>
    %135 = tpu.matmul %132, %134, %cst_117 {dimension_numbers = #tpu.dot_dimension_numbers<[1], [0], [0], [1], [0, 0, 1, 1], [], []>} : vector<1x64xf32>, vector<64x16xf32>, vector<1x16xf32> -> vector<1x16xf32>
    %136 = arith.addf %127, %135 : vector<1x16xf32>
    %c0_118 = arith.constant 0 : index
    %c0_119 = arith.constant 0 : index
    %137 = vector.load %arg7[%c0_118, %c0_119] : memref<1x16xf32, #tpu.memory_space<vmem>>, vector<1x16xf32>
    %138 = arith.mulf %136, %137 : vector<1x16xf32>
    %cst_120 = arith.constant dense<0.000000e+00> : vector<1xf32>
    %139 = vector.multi_reduction <add>, %138, %cst_120 [1] : vector<1x16xf32> to vector<1xf32>
    %140 = vector.shape_cast %139 : vector<1xf32> to vector<1x1xf32>
    %c0_121 = arith.constant 0 : index
    %c0_122 = arith.constant 0 : index
    %141 = vector.load %arg8[%c0_121, %c0_122] : memref<1x1xf32, #tpu.memory_space<vmem>>, vector<1x1xf32>
    %142 = arith.addf %140, %141 : vector<1x1xf32>
    %143 = arith.negf %142 : vector<1x1xf32>
    %144 = math.exp %143 : vector<1x1xf32>
    %cst_123 = arith.constant 1.000000e+00 : f32
    %145 = vector.broadcast %cst_123 : f32 to vector<1x1xf32>
    %146 = arith.addf %145, %144 : vector<1x1xf32>
    %147 = arith.divf %145, %146 : vector<1x1xf32>
    %c0_124 = arith.constant 0 : index
    %c0_125 = arith.constant 0 : index
    %c0_126 = arith.constant 0 : index
    %148 = vector.load %arg9[%c0_124, %c0_125, %c0_126] : memref<1x1x1xf32, #tpu.memory_space<vmem>>, vector<1x1x1xf32>
    %149 = vector.shape_cast %148 : vector<1x1x1xf32> to vector<1x1xf32>
    %150 = vector.shape_cast %147 : vector<1x1xf32> to vector<1x1x1xf32>
    tpu.vector_store %arg9[%c0_124, %c0_125, %c0_126], %150 {strides = array<i32>} : memref<1x1x1xf32, #tpu.memory_space<vmem>>, vector<1x1x1xf32>,
    return
  }
  func.func @transform_0(%arg0: i32) -> (i32, i32, i32) {
    %c0_i32 = arith.constant 0 : i32
    %c0_i32_0 = arith.constant 0 : i32
    %c0_i32_1 = arith.constant 0 : i32
    return %arg0, %c0_i32, %c0_i32_0 : i32, i32, i32
  }
  func.func @transform_1(%arg0: i32) -> (i32, i32) {
    %c0_i32 = arith.constant 0 : i32
    %c0_i32_0 = arith.constant 0 : i32
    %c0_i32_1 = arith.constant 0 : i32
    return %c0_i32, %c0_i32_0 : i32, i32
  }
  func.func @transform_2(%arg0: i32) -> (i32, i32, i32) {
    %c0_i32 = arith.constant 0 : i32
    %c0_i32_0 = arith.constant 0 : i32
    %c0_i32_1 = arith.constant 0 : i32
    %c0_i32_2 = arith.constant 0 : i32
    return %c0_i32, %c0_i32_0, %c0_i32_1 : i32, i32, i32
  }
  func.func @transform_3(%arg0: i32) -> (i32, i32) {
    %c0_i32 = arith.constant 0 : i32
    %c0_i32_0 = arith.constant 0 : i32
    %c0_i32_1 = arith.constant 0 : i32
    return %c0_i32, %c0_i32_0 : i32, i32
  }
  func.func @transform_4(%arg0: i32) -> (i32, i32, i32) {
    %c0_i32 = arith.constant 0 : i32
    %c0_i32_0 = arith.constant 0 : i32
    %c0_i32_1 = arith.constant 0 : i32
    %c0_i32_2 = arith.constant 0 : i32
    return %c0_i32, %c0_i32_0, %c0_i32_1 : i32, i32, i32
  }
  func.func @transform_5(%arg0: i32) -> (i32, i32) {
    %c0_i32 = arith.constant 0 : i32
    %c0_i32_0 = arith.constant 0 : i32
    %c0_i32_1 = arith.constant 0 : i32
    return %c0_i32, %c0_i32_0 : i32, i32
  }
  func.func @transform_6(%arg0: i32) -> (i32, i32) {
    %c0_i32 = arith.constant 0 : i32
    %c0_i32_0 = arith.constant 0 : i32
    %c0_i32_1 = arith.constant 0 : i32
    return %c0_i32, %c0_i32_0 : i32, i32
  }
  func.func @transform_7(%arg0: i32) -> (i32, i32) {
    %c0_i32 = arith.constant 0 : i32
    %c0_i32_0 = arith.constant 0 : i32
    %c0_i32_1 = arith.constant 0 : i32
    return %c0_i32, %c0_i32_0 : i32, i32
  }
  func.func @transform_8(%arg0: i32) -> (i32, i32, i32) {
    %c0_i32 = arith.constant 0 : i32
    %c0_i32_0 = arith.constant 0 : i32
    %c0_i32_1 = arith.constant 0 : i32
    return %arg0, %c0_i32, %c0_i32_0 : i32, i32, i32
  }
}

</mosaic_0001>

<llo_original>
// kernel: reverse
$region0: #{reverse}
  %s0 = inlined_call_operand.vmem [shape: f32[2,4,100], index: 0, kind: input, shape index: {}]
  %s1 = inlined_call_operand.vmem [shape: f32[2,4,100], index: 1, kind: output, shape index: {}]
  %v2 = vlaneseq
  %v3 = vsub.s32 99, %v2
  %4 = vset.pattern.permute.xlu0 %v3
  $region1: #{reverse} parent=0
    #allocation0 [shape = 'u8[16384]{0}', space=vmem, size = 0x4000, scoped, tag = 'operand span for operand 0']
    #allocation1 [shape = 'u8[8192]{0}', space=vmem, size = 0x2000, scoped, tag = 'packed  for operand 0']
    #allocation2 [shape = 'u8[8192]{0}', space=vmem, size = 0x2000, scoped, tag = 'operand span for operand 1']
    #allocation3 [shape = 'u8[4096]{0}', space=vmem, size = 0x1000, scoped, tag = 'packed  for operand 1']
    %s5 = scalar_lea.vmem [#allocation1], 4
    // Predicated region
    $region2: #{reverse} parent=1 // pred_check
      _
    $region3: #{reverse} parent=1 // pred_check_branch
      %7 = sbr.rel (0) target = $region5
    $region4: #{reverse} parent=1 // pred_region
      // Predicated region
      $region6: #{reverse} parent=4 // pred_check
        _
      $region7: #{reverse} parent=4 // pred_check_branch
        %9 = sbr.rel target = $region9
      $region8: #{reverse} parent=4 // pred_region
        // Predicated region
        $region21: #{reverse} parent=8 // pred_check
          _
        $region22: #{reverse} parent=8 // pred_check_branch
          %26 = sbr.rel (0) target = $region24
        $region23: #{reverse} parent=8 // pred_region
          loop: start=0, step=1, limit=1
          $region25: #{reverse} parent=23 // loop_pre_header
            _
          $region26: #{reverse} parent=23 // loop_header
            %s28 = sphi 0, %s32
            %p29 = scmp.ge.s32.totalorder %s28, 1
            %s33 = sphi %s0, %s0
            %s34 = sphi %s5, %s5
          $region27: #{reverse} parent=23 // loop_header_branch
            %31 = sbr.rel (%p29) target = $region31
          $region28: #{reverse} parent=23 // loop_body
            _
          $region29: #{reverse} parent=23 // loop_footer
            %s32 = sadd.s32 1, %s28
          $region30: #{reverse} parent=23 // loop_footer_branch
            %27 = sbr.rel target = $region26
          $region31: #{reverse} parent=23 // loop_exit
            _
          loop: start=0, step=1, limit=1
          $region32: #{reverse} parent=23 // loop_pre_header
            _
          $region33: #{reverse} parent=23 // loop_header
            %s37 = sphi 0, %s41
            %p38 = scmp.ge.s32.totalorder %s37, 1
            %s42 = sphi %s0, %s0
            %s43 = sphi %s5, %s5
          $region34: #{reverse} parent=23 // loop_header_branch
            %40 = sbr.rel (%p38) target = $region38
          $region35: #{reverse} parent=23 // loop_body
            %v44 = vld [vmem:[%s42] sm:$0xf]
            %45 = vst [vmem:[%s43] sm:$0xf] %v44
            %v46 = vld [vmem:[%s42 + $0x4] sm:$0xf]
            %47 = vst [vmem:[%s43 + $0x8] sm:$0xf] %v46
          $region36: #{reverse} parent=23 // loop_footer
            %s41 = sadd.s32 1, %s37
          $region37: #{reverse} parent=23 // loop_footer_branch
            %36 = sbr.rel target = $region33
          $region38: #{reverse} parent=23 // loop_exit
            _
        $region24: #{reverse} parent=8 // pred_fallthru
          _
      $region9: #{reverse} parent=4 // pred_fallthru
        _
      // Predicated region
      $region10: #{reverse} parent=4 // pred_check
        _
      $region11: #{reverse} parent=4 // pred_check_branch
        %11 = sbr.rel (0) target = $region13
      $region12: #{reverse} parent=4 // pred_region
        loop: start=0, step=1, limit=1
        $region14: #{reverse} parent=12 // loop_pre_header
          _
        $region15: #{reverse} parent=12 // loop_header
          %s14 = sphi 0, %s18
          %p15 = scmp.ge.s32.totalorder %s14, 1
          %s19 = sphi %s0, %s0
          %s20 = sphi %s5, %s5
        $region16: #{reverse} parent=12 // loop_header_branch
          %17 = sbr.rel (%p15) target = $region20
        $region17: #{reverse} parent=12 // loop_body
          %v21 = vld [vmem:[%s19] sm:$0xf]
          %22 = vst [vmem:[%s20] sm:$0xf] %v21
          %v23 = vld [vmem:[%s19 + $0x4] sm:$0xf]
          %24 = vst [vmem:[%s20 + $0x8] sm:$0xf] %v23
        $region18: #{reverse} parent=12 // loop_footer
          %s18 = sadd.s32 1, %s14
        $region19: #{reverse} parent=12 // loop_footer_branch
          %13 = sbr.rel target = $region15
        $region20: #{reverse} parent=12 // loop_exit
          _
      $region13: #{reverse} parent=4 // pred_fallthru
        _
    $region5: #{reverse} parent=1 // pred_fallthru
      _
    %48 = vnop
    %s50 = sshllo.u32 0, 4
    %s51 = smul.addr 4, 3
    %s52 = scalar_lea.vmem [#allocation1], %s51
    %v53 = vld [vmem:[%s52] sm:%s50]
    %s54 = scalar_lea.vmem [#allocation0], 24
    %55 = vst [vmem:[%s54] sm:%s50] %v53
    %s56 = smul.addr 4, 2
    %s57 = scalar_lea.vmem [#allocation1], %s56
    %v58 = vld [vmem:[%s57] sm:%s50]
    %s59 = scalar_lea.vmem [#allocation0], 16
    %60 = vst [vmem:[%s59] sm:%s50] %v58
    %s61 = scalar_lea.vmem [#allocation1], 4
    %v62 = vld [vmem:[%s61] sm:%s50]
    %s63 = scalar_lea.vmem [#allocation0], 8
    %64 = vst [vmem:[%s63] sm:%s50] %v62
    %v65 = vld [vmem:[#allocation1] sm:%s50]
    %66 = vst [vmem:[#allocation0] sm:%s50] %v65
    %s67 = scalar_lea.vmem [#allocation0], 7
    %v68 = vld [vmem:[%s67] ss:$-1 sm:$0xff]
    %v69 = vrot.slane %v68, 4
    %70 = vperm.xlu0 %4, %v69
    %v71 = vpop.permute.xlu0 %70
    %72 = vst [vmem:[#allocation2] sm:$0xff] %v71
    %s73 = scalar_lea.vmem [#allocation0], 8
    %s74 = scalar_lea.vmem %s73, 7 [#allocation0]
    %v75 = vld [vmem:[%s74] ss:$-1 sm:$0xff]
    %v76 = vrot.slane %v75, 4
    %77 = vperm.xlu0 %4, %v76
    %v78 = vpop.permute.xlu0 %77
    %v79 = vlaneseq
    %v80 = vshrl.u32 %v79, 7
    %vm81 = vcmp.lt.s32.totalorder %v80, 4
    %82 = vst.msk [vmem:[#allocation2] sm:$0xff] %vm81, %v78
    %s83 = scalar_lea.vmem [#allocation2], 8
    %s84 = scalar_lea.vmem [#allocation0], 16
    %s85 = scalar_lea.vmem %s84, 7 [#allocation0]
    %v86 = vld [vmem:[%s85] ss:$-1 sm:$0xff]
    %v87 = vrot.slane %v86, 4
    %88 = vperm.xlu0 %4, %v87
    %v89 = vpop.permute.xlu0 %88
    %90 = vst [vmem:[%s83] sm:$0xff] %v89
    %s91 = scalar_lea.vmem %s84, 8 [#allocation0]
    %s92 = scalar_lea.vmem %s91, 7 [#allocation0]
    %v93 = vld [vmem:[%s92] ss:$-1 sm:$0xff]
    %v94 = vrot.slane %v93, 4
    %95 = vperm.xlu0 %4, %v94
    %v96 = vpop.permute.xlu0 %95
    %v97 = vlaneseq
    %v98 = vshrl.u32 %v97, 7
    %vm99 = vcmp.lt.s32.totalorder %v98, 4
    %100 = vst.msk [vmem:[%s83] sm:$0xff] %vm99, %v96
    %s102 = sshllo.u32 0, 4
    %v104 = vld [vmem:[#allocation2] sm:%s102]
    %s105 = sshllo.u32 0, 4
    %106 = vst [vmem:[#allocation3] sm:%s105] %v104
    %s107 = scalar_lea.vmem [#allocation2], 8
    %v108 = vld [vmem:[%s107] sm:%s102]
    %s109 = sshllo.u32 0, 4
    %s110 = scalar_lea.vmem [#allocation3], 4
    %111 = vst [vmem:[%s110] sm:%s109] %v108
    // Predicated region
    $region39: #{reverse} parent=1 // pred_check
      _
    $region40: #{reverse} parent=1 // pred_check_branch
      %113 = sbr.rel (0) target = $region42
    $region41: #{reverse} parent=1 // pred_region
      // Predicated region
      $region43: #{reverse} parent=41 // pred_check
        _
      $region44: #{reverse} parent=41 // pred_check_branch
        %115 = sbr.rel target = $region46
      $region45: #{reverse} parent=41 // pred_region
        // Predicated region
        $region58: #{reverse} parent=45 // pred_check
          _
        $region59: #{reverse} parent=45 // pred_check_branch
          %132 = sbr.rel (0) target = $region61
        $region60: #{reverse} parent=45 // pred_region
          loop: start=0, step=1, limit=1
          $region62: #{reverse} parent=60 // loop_pre_header
            _
          $region63: #{reverse} parent=60 // loop_header
            %s134 = sphi 0, %s138
            %p135 = scmp.ge.s32.totalorder %s134, 1
            %s139 = sphi [#allocation3], [#allocation3]
            %s140 = sphi %s1, %s1
          $region64: #{reverse} parent=60 // loop_header_branch
            %137 = sbr.rel (%p135) target = $region68
          $region65: #{reverse} parent=60 // loop_body
            _
          $region66: #{reverse} parent=60 // loop_footer
            %s138 = sadd.s32 1, %s134
          $region67: #{reverse} parent=60 // loop_footer_branch
            %133 = sbr.rel target = $region63
          $region68: #{reverse} parent=60 // loop_exit
            _
          loop: start=0, step=1, limit=1
          $region69: #{reverse} parent=60 // loop_pre_header
            _
          $region70: #{reverse} parent=60 // loop_header
            %s143 = sphi 0, %s147
            %p144 = scmp.ge.s32.totalorder %s143, 1
            %s148 = sphi [#allocation3], [#allocation3]
            %s149 = sphi %s1, %s1
          $region71: #{reverse} parent=60 // loop_header_branch
            %146 = sbr.rel (%p144) target = $region75
          $region72: #{reverse} parent=60 // loop_body
            %v150 = vld [vmem:[%s148] sm:$0xf]
            %151 = vst [vmem:[%s149] sm:$0xf] %v150
            %v152 = vld [vmem:[%s148 + $0x4] sm:$0xf]
            %153 = vst [vmem:[%s149 + $0x4] sm:$0xf] %v152
          $region73: #{reverse} parent=60 // loop_footer
            %s147 = sadd.s32 1, %s143
          $region74: #{reverse} parent=60 // loop_footer_branch
            %142 = sbr.rel target = $region70
          $region75: #{reverse} parent=60 // loop_exit
            _
        $region61: #{reverse} parent=45 // pred_fallthru
          _
      $region46: #{reverse} parent=41 // pred_fallthru
        _
      // Predicated region
      $region47: #{reverse} parent=41 // pred_check
        _
      $region48: #{reverse} parent=41 // pred_check_branch
        %117 = sbr.rel (0) target = $region50
      $region49: #{reverse} parent=41 // pred_region
        loop: start=0, step=1, limit=1
        $region51: #{reverse} parent=49 // loop_pre_header
          _
        $region52: #{reverse} parent=49 // loop_header
          %s120 = sphi 0, %s124
          %p121 = scmp.ge.s32.totalorder %s120, 1
          %s125 = sphi [#allocation3], [#allocation3]
          %s126 = sphi %s1, %s1
        $region53: #{reverse} parent=49 // loop_header_branch
          %123 = sbr.rel (%p121) target = $region57
        $region54: #{reverse} parent=49 // loop_body
          %v127 = vld [vmem:[%s125] sm:$0xf]
          %128 = vst [vmem:[%s126] sm:$0xf] %v127
          %v129 = vld [vmem:[%s125 + $0x4] sm:$0xf]
          %130 = vst [vmem:[%s126 + $0x4] sm:$0xf] %v129
        $region55: #{reverse} parent=49 // loop_footer
          %s124 = sadd.s32 1, %s120
        $region56: #{reverse} parent=49 // loop_footer_branch
          %119 = sbr.rel target = $region52
        $region57: #{reverse} parent=49 // loop_exit
          _
      $region50: #{reverse} parent=41 // pred_fallthru
        _
    $region42: #{reverse} parent=1 // pred_fallthru
      _
    %154 = vnop

// kernel: reverse.2
$region0: #{reverse.2}
  %s0 = inlined_call_operand.vmem [shape: bf16[2,87,16], index: 0, kind: input, shape index: {}]
  %s1 = inlined_call_operand.vmem [shape: bf16[2,87,16], index: 1, kind: output, shape index: {}]
  %v2 = vlaneseq
  %v3 = vsub.s32 86, %v2
  %4 = vset.pattern.permute.xlu0 %v3
  $region1: #{reverse.2} parent=0
    #allocation0 [shape = 'u8[16384]{0}', space=vmem, size = 0x4000, scoped, tag = 'operand span for operand 0']
    #allocation1 [shape = 'u8[8192]{0}', space=vmem, size = 0x2000, scoped, tag = 'packed  for operand 0']
    #allocation2 [shape = 'u8[16384]{0}', space=vmem, size = 0x4000, scoped, tag = 'operand span for operand 1']
    #allocation3 [shape = 'u8[8192]{0}', space=vmem, size = 0x2000, scoped, tag = 'packed  for operand 1']
    // Predicated region
    $region2: #{reverse.2} parent=1 // pred_check
      _
    $region3: #{reverse.2} parent=1 // pred_check_branch
      %6 = sbr.rel (0) target = $region5
    $region4: #{reverse.2} parent=1 // pred_region
      // Predicated region
      $region6: #{reverse.2} parent=4 // pred_check
        _
      $region7: #{reverse.2} parent=4 // pred_check_branch
        %8 = sbr.rel target = $region9
      $region8: #{reverse.2} parent=4 // pred_region
        // Predicated region
        $region21: #{reverse.2} parent=8 // pred_check
          _
        $region22: #{reverse.2} parent=8 // pred_check_branch
          %29 = sbr.rel (0) target = $region24
        $region23: #{reverse.2} parent=8 // pred_region
          loop: start=0, step=1, limit=1
          $region25: #{reverse.2} parent=23 // loop_pre_header
            _
          $region26: #{reverse.2} parent=23 // loop_header
            %s31 = sphi 0, %s35
            %p32 = scmp.ge.s32.totalorder %s31, 1
            %s36 = sphi %s0, %s0
            %s37 = sphi [#allocation1], [#allocation1]
          $region27: #{reverse.2} parent=23 // loop_header_branch
            %34 = sbr.rel (%p32) target = $region31
          $region28: #{reverse.2} parent=23 // loop_body
            _
          $region29: #{reverse.2} parent=23 // loop_footer
            %s35 = sadd.s32 1, %s31
          $region30: #{reverse.2} parent=23 // loop_footer_branch
            %30 = sbr.rel target = $region26
          $region31: #{reverse.2} parent=23 // loop_exit
            _
          loop: start=0, step=1, limit=1
          $region32: #{reverse.2} parent=23 // loop_pre_header
            _
          $region33: #{reverse.2} parent=23 // loop_header
            %s40 = sphi 0, %s44
            %p41 = scmp.ge.s32.totalorder %s40, 1
            %s45 = sphi %s0, %s0
            %s46 = sphi [#allocation1], [#allocation1]
          $region34: #{reverse.2} parent=23 // loop_header_branch
            %43 = sbr.rel (%p41) target = $region38
          $region35: #{reverse.2} parent=23 // loop_body
            %v47 = vld [vmem:[%s45] sm:$0xf]
            %48 = vst [vmem:[%s46] sm:$0xf] %v47
            %v49 = vld [vmem:[%s45 + $0x4] sm:$0xf]
            %50 = vst [vmem:[%s46 + $0x4] sm:$0xf] %v49
            %v51 = vld [vmem:[%s45 + $0x8] sm:$0xf]
            %52 = vst [vmem:[%s46 + $0x8] sm:$0xf] %v51
            %v53 = vld [vmem:[%s45 + $0xc] sm:$0xf]
            %54 = vst [vmem:[%s46 + $0xc] sm:$0xf] %v53
          $region36: #{reverse.2} parent=23 // loop_footer
            %s44 = sadd.s32 1, %s40
          $region37: #{reverse.2} parent=23 // loop_footer_branch
            %39 = sbr.rel target = $region33
          $region38: #{reverse.2} parent=23 // loop_exit
            _
        $region24: #{reverse.2} parent=8 // pred_fallthru
          _
      $region9: #{reverse.2} parent=4 // pred_fallthru
        _
      // Predicated region
      $region10: #{reverse.2} parent=4 // pred_check
        _
      $region11: #{reverse.2} parent=4 // pred_check_branch
        %10 = sbr.rel (0) target = $region13
      $region12: #{reverse.2} parent=4 // pred_region
        loop: start=0, step=1, limit=1
        $region14: #{reverse.2} parent=12 // loop_pre_header
          _
        $region15: #{reverse.2} parent=12 // loop_header
          %s13 = sphi 0, %s17
          %p14 = scmp.ge.s32.totalorder %s13, 1
          %s18 = sphi %s0, %s0
          %s19 = sphi [#allocation1], [#allocation1]
        $region16: #{reverse.2} parent=12 // loop_header_branch
          %16 = sbr.rel (%p14) target = $region20
        $region17: #{reverse.2} parent=12 // loop_body
          %v20 = vld [vmem:[%s18] sm:$0xf]
          %21 = vst [vmem:[%s19] sm:$0xf] %v20
          %v22 = vld [vmem:[%s18 + $0x4] sm:$0xf]
          %23 = vst [vmem:[%s19 + $0x4] sm:$0xf] %v22
          %v24 = vld [vmem:[%s18 + $0x8] sm:$0xf]
          %25 = vst [vmem:[%s19 + $0x8] sm:$0xf] %v24
          %v26 = vld [vmem:[%s18 + $0xc] sm:$0xf]
          %27 = vst [vmem:[%s19 + $0xc] sm:$0xf] %v26
        $region18: #{reverse.2} parent=12 // loop_footer
          %s17 = sadd.s32 1, %s13
        $region19: #{reverse.2} parent=12 // loop_footer_branch
          %12 = sbr.rel target = $region15
        $region20: #{reverse.2} parent=12 // loop_exit
          _
      $region13: #{reverse.2} parent=4 // pred_fallthru
        _
    $region5: #{reverse.2} parent=1 // pred_fallthru
      _
    %55 = vnop
    %s57 = smul.u32 4, 2
    %s58 = sshllo.u32 0, %s57
    %s59 = smul.addr 4, 3
    %s60 = scalar_lea.vmem [#allocation1], %s59
    %s61 = sshrl.u32 %s58, 1
    %s62 = sor.u32 %s58, %s61
    %s63 = sand.u32 %s62, 85
    %s64 = sshrl.u32 %s63, 1
    %s65 = sor.u32 %s63, %s64
    %s66 = sand.u32 51, %s65
    %s67 = sshrl.u32 %s66, 2
    %s68 = sor.u32 %s66, %s67
    %s69 = sand.u32 15, %s68
    %v70 = vld [vmem:[%s60] sm:%s69]
    %v71 = vunpack.c.l.bf16 %v70
    %v72 = vunpack.c.h.bf16 %v70
    %s73 = scalar_lea.vmem [#allocation0], 24
    %74 = vst [vmem:[%s73] sm:%s58] %v71
    %s75 = smul.addr 4, 2
    %s76 = scalar_lea.vmem [#allocation1], %s75
    %s77 = sshrl.u32 %s58, 1
    %s78 = sor.u32 %s58, %s77
    %s79 = sand.u32 %s78, 85
    %s80 = sshrl.u32 %s79, 1
    %s81 = sor.u32 %s79, %s80
    %s82 = sand.u32 51, %s81
    %s83 = sshrl.u32 %s82, 2
    %s84 = sor.u32 %s82, %s83
    %s85 = sand.u32 15, %s84
    %v86 = vld [vmem:[%s76] sm:%s85]
    %v87 = vunpack.c.l.bf16 %v86
    %v88 = vunpack.c.h.bf16 %v86
    %s89 = scalar_lea.vmem [#allocation0], 16
    %90 = vst [vmem:[%s89] sm:%s58] %v87
    %s91 = scalar_lea.vmem [#allocation1], 4
    %s92 = sshrl.u32 %s58, 1
    %s93 = sor.u32 %s58, %s92
    %s94 = sand.u32 %s93, 85
    %s95 = sshrl.u32 %s94, 1
    %s96 = sor.u32 %s94, %s95
    %s97 = sand.u32 51, %s96
    %s98 = sshrl.u32 %s97, 2
    %s99 = sor.u32 %s97, %s98
    %s100 = sand.u32 15, %s99
    %v101 = vld [vmem:[%s91] sm:%s100]
    %v102 = vunpack.c.l.bf16 %v101
    %v103 = vunpack.c.h.bf16 %v101
    %s104 = scalar_lea.vmem [#allocation0], 8
    %105 = vst [vmem:[%s104] sm:%s58] %v102
    %s106 = sshrl.u32 %s58, 1
    %s107 = sor.u32 %s58, %s106
    %s108 = sand.u32 %s107, 85
    %s109 = sshrl.u32 %s108, 1
    %s110 = sor.u32 %s108, %s109
    %s111 = sand.u32 51, %s110
    %s112 = sshrl.u32 %s111, 2
    %s113 = sor.u32 %s111, %s112
    %s114 = sand.u32 15, %s113
    %v115 = vld [vmem:[#allocation1] sm:%s114]
    %v116 = vunpack.c.l.bf16 %v115
    %v117 = vunpack.c.h.bf16 %v115
    %118 = vst [vmem:[#allocation0] sm:%s58] %v116
    %v119 = vld [vmem:[#allocation0] sm:$0xff]
    %120 = vperm.xlu0 %4, %v119
    %v121 = vpop.permute.xlu0 %120
    %122 = vst [vmem:[#allocation2] sm:$0xff] %v121
    %s123 = scalar_lea.vmem [#allocation2], 8
    %s124 = scalar_lea.vmem [#allocation0], 8
    %v125 = vld [vmem:[%s124] sm:$0xff]
    %126 = vperm.xlu0 %4, %v125
    %v127 = vpop.permute.xlu0 %126
    %128 = vst [vmem:[%s123] sm:$0xff] %v127
    %s129 = scalar_lea.vmem [#allocation2], 16
    %s130 = scalar_lea.vmem [#allocation0], 16
    %v131 = vld [vmem:[%s130] sm:$0xff]
    %132 = vperm.xlu0 %4, %v131
    %v133 = vpop.permute.xlu0 %132
    %134 = vst [vmem:[%s129] sm:$0xff] %v133
    %s135 = scalar_lea.vmem %s129, 8 [#allocation2]
    %s136 = scalar_lea.vmem %s130, 8 [#allocation0]
    %v137 = vld [vmem:[%s136] sm:$0xff]
    %138 = vperm.xlu0 %4, %v137
    %v139 = vpop.permute.xlu0 %138
    %140 = vst [vmem:[%s135] sm:$0xff] %v139
    %s142 = smul.u32 4, 2
    %s143 = sshllo.u32 0, %s142
    %s144 = sshrl.u32 %s142, 1
    %v145 = vld [vmem:[#allocation2] sm:%s143]
    %v146 = vpack.c.bf16 0.0, %v145
    %s147 = sshllo.u32 0, %s144
    %148 = vst [vmem:[#allocation3] sm:%s147] %v146
    %s149 = scalar_lea.vmem [#allocation2], 8
    %v150 = vld [vmem:[%s149] sm:%s143]
    %v151 = vpack.c.bf16 0.0, %v150
    %s152 = sshllo.u32 0, %s144
    %s153 = scalar_lea.vmem [#allocation3], 4
    %154 = vst [vmem:[%s153] sm:%s152] %v151
    %s155 = scalar_lea.vmem [#allocation2], 16
    %v156 = vld [vmem:[%s155] sm:%s143]
    %v157 = vpack.c.bf16 0.0, %v156
    %s158 = sshllo.u32 0, %s144
    %s159 = smul.addr 4, 2
    %s160 = scalar_lea.vmem [#allocation3], %s159
    %161 = vst [vmem:[%s160] sm:%s158] %v157
    %s162 = scalar_lea.vmem [#allocation2], 24
    %v163 = vld [vmem:[%s162] sm:%s143]
    %v164 = vpack.c.bf16 0.0, %v163
    %s165 = sshllo.u32 0, %s144
    %s166 = smul.addr 4, 3
    %s167 = scalar_lea.vmem [#allocation3], %s166
    %168 = vst [vmem:[%s167] sm:%s165] %v164
    // Predicated region
    $region39: #{reverse.2} parent=1 // pred_check
      _
    $region40: #{reverse.2} parent=1 // pred_check_branch
      %170 = sbr.rel (0) target = $region42
    $region41: #{reverse.2} parent=1 // pred_region
      // Predicated region
      $region43: #{reverse.2} parent=41 // pred_check
        _
      $region44: #{reverse.2} parent=41 // pred_check_branch
        %172 = sbr.rel target = $region46
      $region45: #{reverse.2} parent=41 // pred_region
        // Predicated region
        $region58: #{reverse.2} parent=45 // pred_check
          _
        $region59: #{reverse.2} parent=45 // pred_check_branch
          %193 = sbr.rel (0) target = $region61
        $region60: #{reverse.2} parent=45 // pred_region
          loop: start=0, step=1, limit=1
          $region62: #{reverse.2} parent=60 // loop_pre_header
            _
          $region63: #{reverse.2} parent=60 // loop_header
            %s195 = sphi 0, %s199
            %p196 = scmp.ge.s32.totalorder %s195, 1
            %s200 = sphi [#allocation3], [#allocation3]
            %s201 = sphi %s1, %s1
          $region64: #{reverse.2} parent=60 // loop_header_branch
            %198 = sbr.rel (%p196) target = $region68
          $region65: #{reverse.2} parent=60 // loop_body
            _
          $region66: #{reverse.2} parent=60 // loop_footer
            %s199 = sadd.s32 1, %s195
          $region67: #{reverse.2} parent=60 // loop_footer_branch
            %194 = sbr.rel target = $region63
          $region68: #{reverse.2} parent=60 // loop_exit
            _
          loop: start=0, step=1, limit=1
          $region69: #{reverse.2} parent=60 // loop_pre_header
            _
          $region70: #{reverse.2} parent=60 // loop_header
            %s204 = sphi 0, %s208
            %p205 = scmp.ge.s32.totalorder %s204, 1
            %s209 = sphi [#allocation3], [#allocation3]
            %s210 = sphi %s1, %s1
          $region71: #{reverse.2} parent=60 // loop_header_branch
            %207 = sbr.rel (%p205) target = $region75
          $region72: #{reverse.2} parent=60 // loop_body
            %v211 = vld [vmem:[%s209] sm:$0xf]
            %212 = vst [vmem:[%s210] sm:$0xf] %v211
            %v213 = vld [vmem:[%s209 + $0x4] sm:$0xf]
            %214 = vst [vmem:[%s210 + $0x4] sm:$0xf] %v213
            %v215 = vld [vmem:[%s209 + $0x8] sm:$0xf]
            %216 = vst [vmem:[%s210 + $0x8] sm:$0xf] %v215
            %v217 = vld [vmem:[%s209 + $0xc] sm:$0xf]
            %218 = vst [vmem:[%s210 + $0xc] sm:$0xf] %v217
          $region73: #{reverse.2} parent=60 // loop_footer
            %s208 = sadd.s32 1, %s204
          $region74: #{reverse.2} parent=60 // loop_footer_branch
            %203 = sbr.rel target = $region70
          $region75: #{reverse.2} parent=60 // loop_exit
            _
        $region61: #{reverse.2} parent=45 // pred_fallthru
          _
      $region46: #{reverse.2} parent=41 // pred_fallthru
        _
      // Predicated region
      $region47: #{reverse.2} parent=41 // pred_check
        _
      $region48: #{reverse.2} parent=41 // pred_check_branch
        %174 = sbr.rel (0) target = $region50
      $region49: #{reverse.2} parent=41 // pred_region
        loop: start=0, step=1, limit=1
        $region51: #{reverse.2} parent=49 // loop_pre_header
          _
        $region52: #{reverse.2} parent=49 // loop_header
          %s177 = sphi 0, %s181
          %p178 = scmp.ge.s32.totalorder %s177, 1
          %s182 = sphi [#allocation3], [#allocation3]
          %s183 = sphi %s1, %s1
        $region53: #{reverse.2} parent=49 // loop_header_branch
          %180 = sbr.rel (%p178) target = $region57
        $region54: #{reverse.2} parent=49 // loop_body
          %v184 = vld [vmem:[%s182] sm:$0xf]
          %185 = vst [vmem:[%s183] sm:$0xf] %v184
          %v186 = vld [vmem:[%s182 + $0x4] sm:$0xf]
          %187 = vst [vmem:[%s183 + $0x4] sm:$0xf] %v186
          %v188 = vld [vmem:[%s182 + $0x8] sm:$0xf]
          %189 = vst [vmem:[%s183 + $0x8] sm:$0xf] %v188
          %v190 = vld [vmem:[%s182 + $0xc] sm:$0xf]
          %191 = vst [vmem:[%s183 + $0xc] sm:$0xf] %v190
        $region55: #{reverse.2} parent=49 // loop_footer
          %s181 = sadd.s32 1, %s177
        $region56: #{reverse.2} parent=49 // loop_footer_branch
          %176 = sbr.rel target = $region52
        $region57: #{reverse.2} parent=49 // loop_exit
          _
      $region50: #{reverse.2} parent=41 // pred_fallthru
        _
    $region42: #{reverse.2} parent=1 // pred_fallthru
      _
    %219 = vnop

// kernel: hocnnlb_forward.1
$region0: #{hocnnlb_forward.1}
  #allocation0 [shape = 'u32[]', space=smem, size = 0x4, offset = 0x4, fixed_abs, tag = 'smem constant byte address 0x4 - core index']
  #allocation1 [shape = 'u32[144,128]{1,0:T(1,128)}', space=vmem, size = 0x12000, scoped, tag = 'internal scratch']
  #allocation2 [shape = 'f32[32,32]{1,0:T(8,128)}', space=vmem, size = 0x4000, scoped, tag = 'scratch operand']
  #allocation3 [shape = 'f32[20,64]{1,0:T(8,128)}', space=vmem, size = 0x3000, scoped, tag = 'scratch operand']
  #allocation4 [shape = 'f32[1,1]{1,0:T(1,128)S(1)}', space=vmem, size = 0x200, scoped, tag = 'scoped memory for hocnnlb_forward.1']
  %s0 = inlined_call_operand.vmem [shape: bf16[2,192,192], index: 0, kind: input, shape index: {}]
  %s1 = inlined_call_operand.vmem [shape: bf16[192,32], index: 1, kind: input, shape index: {}]
  %s2 = inlined_call_operand.vmem [shape: bf16[10,32,64], index: 2, kind: input, shape index: {}]
  %s3 = inlined_call_operand.vmem [shape: f32[1,64], index: 3, kind: input, shape index: {}]
  %s4 = inlined_call_operand.vmem [shape: f32[6,64,16], index: 4, kind: input, shape index: {}]
  %s5 = inlined_call_operand.vmem [shape: f32[1,16], index: 5, kind: input, shape index: {}]
  %s6 = inlined_call_operand.vmem [shape: f32[1,16], index: 6, kind: input, shape index: {}]
  %s7 = inlined_call_operand.<no memory space> [shape: f32[1,1], index: 7, kind: input, shape index: {}]
  %s8 = inlined_call_operand.vmem [shape: f32[2,1,1], index: 8, kind: output, shape index: {}]
  %s9 = sld [smem:[#allocation0]]
  $region65: #{hocnnlb_forward.1} parent=0
    _
  %s11 = ssub.s32 1, %s9
  %s12 = scalar_select 0, %s11, %s9
  %v13 = vstv %s7
  %14 = vst [vmem:[#allocation4] sm:$0x1] %v13
  loop: start=0, step=1, limit=4
  $region2: #{hocnnlb_forward.1} parent=0 // loop_pre_header
    _
  $region3: #{hocnnlb_forward.1} parent=0 // loop_header
    %s16 = sphi 0, %s20
    %p17 = scmp.ge.s32.totalorder %s16, 4
    %s26 = sphi 0, %s28
    %s29 = sphi 0, %s26
    %s30 = sphi 0, %s29
    %s46 = sphi 0, %s30
    %s50 = sphi 0, %s50
    %s52 = sphi 0, %s50
    %s53 = sphi 0, %s52
    %s67 = sphi 0, %s53
    %s71 = sphi 0, %s71
    %s73 = sphi 0, %s71
    %s74 = sphi 0, %s73
    %s88 = sphi 0, %s74
    %s92 = sphi 0, %s92
    %s94 = sphi 0, %s92
    %s95 = sphi 0, %s94
    %s109 = sphi 0, %s95
    %s113 = sphi 0, %s113
    %s115 = sphi 0, %s113
    %s116 = sphi 0, %s115
    %s130 = sphi 0, %s116
    %s134 = sphi 0, %s134
    %s136 = sphi 0, %s134
    %s137 = sphi 0, %s136
    %s151 = sphi 0, %s137
    %s155 = sphi 0, %s155
    %s157 = sphi 0, %s155
    %s158 = sphi 0, %s157
    %s172 = sphi 0, %s158
    %s176 = sphi 0, %s176
    %s178 = sphi 0, %s176
    %s179 = sphi 0, %s178
    %s193 = sphi 0, %s179
    %s199 = sphi 0, %s201
    %s202 = sphi 0, %s199
    %s203 = sphi 0, %s202
    %s219 = sphi 0, %s203
  $region4: #{hocnnlb_forward.1} parent=0 // loop_header_branch
    %19 = sbr.rel (%p17) target = $region8
  $region5: #{hocnnlb_forward.1} parent=0 // loop_body
    %s21 = ssub.s32 %s16, 1
    %s22 = ssub.s32 %s16, 2
    %s23 = sadd.s32 %s16, 1
    %s24 = ssub.s32 %s16, %s23
    %p25 = scmp.eq.s32.totalorder %s24, 0
    %s27 = sadd.s32 %s26, 1
    %s28 = scalar_select %p25, %s26, %s27
    %p31 = pneg %p25
    %p32 = scmp.eq.s32.totalorder %s16, 1
    %p33 = por %p31, %p32
    %p34 = scmp.ne.s32.totalorder %s26, %s29
    %p35 = scmp.eq.s32.totalorder %s16, 0
    %p36 = por %p34, %p35
    %p37 = scmp.ne.s32.totalorder %s26, %s29
    %p38 = scmp.eq.s32.totalorder %s21, 1
    %p39 = por %p37, %p38
    %p40 = scmp.ne.s32.totalorder %s29, %s30
    %p41 = scmp.eq.s32.totalorder %s21, 0
    %p42 = por %p40, %p41
    %p43 = scmp.ne.s32.totalorder %s29, %s30
    %p44 = scmp.eq.s32.totalorder %s22, 1
    %p45 = por %p43, %p44
    %p47 = scmp.ne.s32.totalorder %s30, %s46
    %p48 = scmp.eq.s32.totalorder %s22, 0
    %p49 = por %p47, %p48
    %s51 = sadd.s32 %s50, 1
    %p54 = scmp.eq.s32.totalorder %s16, 1
    %p55 = scmp.ne.s32.totalorder %s50, %s52
    %p56 = scmp.eq.s32.totalorder %s16, 0
    %p57 = por %p55, %p56
    %p58 = scmp.ne.s32.totalorder %s50, %s52
    %p59 = scmp.eq.s32.totalorder %s21, 1
    %p60 = por %p58, %p59
    %p61 = scmp.ne.s32.totalorder %s52, %s53
    %p62 = scmp.eq.s32.totalorder %s21, 0
    %p63 = por %p61, %p62
    %p64 = scmp.ne.s32.totalorder %s52, %s53
    %p65 = scmp.eq.s32.totalorder %s22, 1
    %p66 = por %p64, %p65
    %p68 = scmp.ne.s32.totalorder %s53, %s67
    %p69 = scmp.eq.s32.totalorder %s22, 0
    %p70 = por %p68, %p69
    %s72 = sadd.s32 %s71, 1
    %p75 = scmp.eq.s32.totalorder %s16, 1
    %p76 = scmp.ne.s32.totalorder %s71, %s73
    %p77 = scmp.eq.s32.totalorder %s16, 0
    %p78 = por %p76, %p77
    %p79 = scmp.ne.s32.totalorder %s71, %s73
    %p80 = scmp.eq.s32.totalorder %s21, 1
    %p81 = por %p79, %p80
    %p82 = scmp.ne.s32.totalorder %s73, %s74
    %p83 = scmp.eq.s32.totalorder %s21, 0
    %p84 = por %p82, %p83
    %p85 = scmp.ne.s32.totalorder %s73, %s74
    %p86 = scmp.eq.s32.totalorder %s22, 1
    %p87 = por %p85, %p86
    %p89 = scmp.ne.s32.totalorder %s74, %s88
    %p90 = scmp.eq.s32.totalorder %s22, 0
    %p91 = por %p89, %p90
    %s93 = sadd.s32 %s92, 1
    %p96 = scmp.eq.s32.totalorder %s16, 1
    %p97 = scmp.ne.s32.totalorder %s92, %s94
    %p98 = scmp.eq.s32.totalorder %s16, 0
    %p99 = por %p97, %p98
    %p100 = scmp.ne.s32.totalorder %s92, %s94
    %p101 = scmp.eq.s32.totalorder %s21, 1
    %p102 = por %p100, %p101
    %p103 = scmp.ne.s32.totalorder %s94, %s95
    %p104 = scmp.eq.s32.totalorder %s21, 0
    %p105 = por %p103, %p104
    %p106 = scmp.ne.s32.totalorder %s94, %s95
    %p107 = scmp.eq.s32.totalorder %s22, 1
    %p108 = por %p106, %p107
    %p110 = scmp.ne.s32.totalorder %s95, %s109
    %p111 = scmp.eq.s32.totalorder %s22, 0
    %p112 = por %p110, %p111
    %s114 = sadd.s32 %s113, 1
    %p117 = scmp.eq.s32.totalorder %s16, 1
    %p118 = scmp.ne.s32.totalorder %s113, %s115
    %p119 = scmp.eq.s32.totalorder %s16, 0
    %p120 = por %p118, %p119
    %p121 = scmp.ne.s32.totalorder %s113, %s115
    %p122 = scmp.eq.s32.totalorder %s21, 1
    %p123 = por %p121, %p122
    %p124 = scmp.ne.s32.totalorder %s115, %s116
    %p125 = scmp.eq.s32.totalorder %s21, 0
    %p126 = por %p124, %p125
    %p127 = scmp.ne.s32.totalorder %s115, %s116
    %p128 = scmp.eq.s32.totalorder %s22, 1
    %p129 = por %p127, %p128
    %p131 = scmp.ne.s32.totalorder %s116, %s130
    %p132 = scmp.eq.s32.totalorder %s22, 0
    %p133 = por %p131, %p132
    %s135 = sadd.s32 %s134, 1
    %p138 = scmp.eq.s32.totalorder %s16, 1
    %p139 = scmp.ne.s32.totalorder %s134, %s136
    %p140 = scmp.eq.s32.totalorder %s16, 0
    %p141 = por %p139, %p140
    %p142 = scmp.ne.s32.totalorder %s134, %s136
    %p143 = scmp.eq.s32.totalorder %s21, 1
    %p144 = por %p142, %p143
    %p145 = scmp.ne.s32.totalorder %s136, %s137
    %p146 = scmp.eq.s32.totalorder %s21, 0
    %p147 = por %p145, %p146
    %p148 = scmp.ne.s32.totalorder %s136, %s137
    %p149 = scmp.eq.s32.totalorder %s22, 1
    %p150 = por %p148, %p149
    %p152 = scmp.ne.s32.totalorder %s137, %s151
    %p153 = scmp.eq.s32.totalorder %s22, 0
    %p154 = por %p152, %p153
    %s156 = sadd.s32 %s155, 1
    %p159 = scmp.eq.s32.totalorder %s16, 1
    %p160 = scmp.ne.s32.totalorder %s155, %s157
    %p161 = scmp.eq.s32.totalorder %s16, 0
    %p162 = por %p160, %p161
    %p163 = scmp.ne.s32.totalorder %s155, %s157
    %p164 = scmp.eq.s32.totalorder %s21, 1
    %p165 = por %p163, %p164
    %p166 = scmp.ne.s32.totalorder %s157, %s158
    %p167 = scmp.eq.s32.totalorder %s21, 0
    %p168 = por %p166, %p167
    %p169 = scmp.ne.s32.totalorder %s157, %s158
    %p170 = scmp.eq.s32.totalorder %s22, 1
    %p171 = por %p169, %p170
    %p173 = scmp.ne.s32.totalorder %s158, %s172
    %p174 = scmp.eq.s32.totalorder %s22, 0
    %p175 = por %p173, %p174
    %s177 = sadd.s32 %s176, 1
    %p180 = scmp.eq.s32.totalorder %s16, 1
    %p181 = scmp.ne.s32.totalorder %s176, %s178
    %p182 = scmp.eq.s32.totalorder %s16, 0
    %p183 = por %p181, %p182
    %p184 = scmp.ne.s32.totalorder %s176, %s178
    %p185 = scmp.eq.s32.totalorder %s21, 1
    %p186 = por %p184, %p185
    %p187 = scmp.ne.s32.totalorder %s178, %s179
    %p188 = scmp.eq.s32.totalorder %s21, 0
    %p189 = por %p187, %p188
    %p190 = scmp.ne.s32.totalorder %s178, %s179
    %p191 = scmp.eq.s32.totalorder %s22, 1
    %p192 = por %p190, %p191
    %p194 = scmp.ne.s32.totalorder %s179, %s193
    %p195 = scmp.eq.s32.totalorder %s22, 0
    %p196 = por %p194, %p195
    %s197 = ssub.s32 %s16, %s23
    %p198 = scmp.eq.s32.totalorder %s197, 0
    %s200 = sadd.s32 %s199, 1
    %s201 = scalar_select %p198, %s199, %s200
    %p204 = pneg %p198
    %p205 = scmp.eq.s32.totalorder %s16, 1
    %p206 = por %p204, %p205
    %p207 = scmp.ne.s32.totalorder %s199, %s202
    %p208 = scmp.eq.s32.totalorder %s16, 0
    %p209 = por %p207, %p208
    %p210 = scmp.ne.s32.totalorder %s199, %s202
    %p211 = scmp.eq.s32.totalorder %s21, 1
    %p212 = por %p210, %p211
    %p213 = scmp.ne.s32.totalorder %s202, %s203
    %p214 = scmp.eq.s32.totalorder %s21, 0
    %p215 = por %p213, %p214
    %p216 = scmp.ne.s32.totalorder %s202, %s203
    %p217 = scmp.eq.s32.totalorder %s22, 1
    %p218 = por %p216, %p217
    %p220 = scmp.ne.s32.totalorder %s203, %s219
    %p221 = scmp.eq.s32.totalorder %s22, 0
    %p222 = por %p220, %p221
    %p223 = scmp.le.s32.totalorder 1, %s16
    %p224 = scmp.lt.s32.totalorder %s16, 3
    %p225 = pnand %p223, %p224
    %p226 = pneg %p225
    // Predicated region
    $region9: #{hocnnlb_forward.1} parent=5 // pred_check
      _
    $region10: #{hocnnlb_forward.1} parent=5 // pred_check_branch
      %228 = sbr.rel (%p225) target = $region12
    $region11: #{hocnnlb_forward.1} parent=5 // pred_region
      %s229 = ssub.s32 %s16, 1
      // Predicated region
      $region13: #{hocnnlb_forward.1} parent=11 // pred_check
        %p230 = pneg %p63
      $region14: #{hocnnlb_forward.1} parent=11 // pred_check_branch
        %232 = sbr.rel (%p230) target = $region16
      $region15: #{hocnnlb_forward.1} parent=11 // pred_region
        _
      $region16: #{hocnnlb_forward.1} parent=11 // pred_fallthru
        _
      // Predicated region
      $region17: #{hocnnlb_forward.1} parent=11 // pred_check
        %p233 = pneg %p84
      $region18: #{hocnnlb_forward.1} parent=11 // pred_check_branch
        %235 = sbr.rel (%p233) target = $region20
      $region19: #{hocnnlb_forward.1} parent=11 // pred_region
        _
      $region20: #{hocnnlb_forward.1} parent=11 // pred_fallthru
        _
      // Predicated region
      $region21: #{hocnnlb_forward.1} parent=11 // pred_check
        %p236 = pneg %p105
      $region22: #{hocnnlb_forward.1} parent=11 // pred_check_branch
        %238 = sbr.rel (%p236) target = $region24
      $region23: #{hocnnlb_forward.1} parent=11 // pred_region
        _
      $region24: #{hocnnlb_forward.1} parent=11 // pred_fallthru
        _
      // Predicated region
      $region25: #{hocnnlb_forward.1} parent=11 // pred_check
        %p239 = pneg %p126
      $region26: #{hocnnlb_forward.1} parent=11 // pred_check_branch
        %241 = sbr.rel (%p239) target = $region28
      $region27: #{hocnnlb_forward.1} parent=11 // pred_region
        _
      $region28: #{hocnnlb_forward.1} parent=11 // pred_fallthru
        _
      // Predicated region
      $region29: #{hocnnlb_forward.1} parent=11 // pred_check
        %p242 = pneg %p147
      $region30: #{hocnnlb_forward.1} parent=11 // pred_check_branch
        %244 = sbr.rel (%p242) target = $region32
      $region31: #{hocnnlb_forward.1} parent=11 // pred_region
        _
      $region32: #{hocnnlb_forward.1} parent=11 // pred_fallthru
        _
      // Predicated region
      $region33: #{hocnnlb_forward.1} parent=11 // pred_check
        %p245 = pneg %p168
      $region34: #{hocnnlb_forward.1} parent=11 // pred_check_branch
        %247 = sbr.rel (%p245) target = $region36
      $region35: #{hocnnlb_forward.1} parent=11 // pred_region
        _
      $region36: #{hocnnlb_forward.1} parent=11 // pred_fallthru
        _
      // Predicated region
      $region37: #{hocnnlb_forward.1} parent=11 // pred_check
        %p248 = pneg %p189
      $region38: #{hocnnlb_forward.1} parent=11 // pred_check_branch
        %250 = sbr.rel (%p248) target = $region40
      $region39: #{hocnnlb_forward.1} parent=11 // pred_region
        _
      $region40: #{hocnnlb_forward.1} parent=11 // pred_fallthru
        _
    $region12: #{hocnnlb_forward.1} parent=5 // pred_fallthru
      _
    %p251 = scmp.lt.s32.totalorder %s16, 2
    // Predicated region
    $region41: #{hocnnlb_forward.1} parent=5 // pred_check
      %p252 = pneg %p251
    $region42: #{hocnnlb_forward.1} parent=5 // pred_check_branch
      %254 = sbr.rel (%p252) target = $region44
    $region43: #{hocnnlb_forward.1} parent=5 // pred_region
      // Predicated region
      $region45: #{hocnnlb_forward.1} parent=43 // pred_check
        %p255 = pneg %p36
      $region46: #{hocnnlb_forward.1} parent=43 // pred_check_branch
        %257 = sbr.rel (%p255) target = $region48
      $region47: #{hocnnlb_forward.1} parent=43 // pred_region
        %p258 = scmp.lt.s32.totalorder %s16, 1
        %s259 = scalar_select %p258, %s16, 1
        %s260 = smul.addr %s259, 48
        %s261 = smul.addr %s260, 4
        %s262 = scalar_lea.vmem %s0, %s261
      $region48: #{hocnnlb_forward.1} parent=43 // pred_fallthru
        _
    $region44: #{hocnnlb_forward.1} parent=5 // pred_fallthru
      _
    %p263 = scmp.le.s32.totalorder 1, %s16
    %p264 = scmp.lt.s32.totalorder %s16, 3
    %p265 = pnand %p263, %p264
    %p266 = pneg %p265
    // Predicated region
    $region49: #{hocnnlb_forward.1} parent=5 // pred_check
      _
    $region50: #{hocnnlb_forward.1} parent=5 // pred_check_branch
      %268 = sbr.rel (%p265) target = $region52
    $region51: #{hocnnlb_forward.1} parent=5 // pred_region
      %s269 = ssub.s32 %s16, 1
      %p270 = scmp.lt.s32.totalorder %s21, 1
      %s271 = scalar_select %p270, %s21, 1
      %s272 = smul.addr %s271, 48
      %s273 = smul.addr %s272, 4
      %s274 = scalar_lea.vmem %s0, %s273
      %p275 = pneg %p42
      %p276 = pneg %p39
      %p277 = pneg %p63
      %p278 = pneg %p60
      %p279 = pneg %p84
      %p280 = pneg %p81
      %p281 = pneg %p105
      %p282 = pneg %p102
      %p283 = pneg %p126
      %p284 = pneg %p123
      %p285 = pneg %p147
      %p286 = pneg %p144
      %p287 = pneg %p168
      %p288 = pneg %p165
      %p289 = pneg %p189
      %p290 = pneg %p186
      %p291 = pneg %p215
      %p292 = pneg %p212
      %p293 = scmp.lt.s32.totalorder %s21, 1
      %s294 = scalar_select %p293, %s21, 1
      %s295 = scalar_lea.vmem %s8, %s294
      %p296 = scmp.lt.s32.totalorder %s21, 1
      %s297 = scalar_select %p296, %s21, 1
      %s298 = smul.addr %s297, 48
      %s299 = smul.addr %s298, 4
      %s300 = scalar_lea.vmem %s0, %s299
      %p301 = scmp.lt.s32.totalorder %s21, 1
      %s302 = scalar_select %p301, %s21, 1
      %s303 = scalar_lea.vmem %s8, %s302
      %v305 = vld [vmem:[%s300] sm:$0xff]
      %v306 = vld [vmem:[%s300 + $0x8] sm:$0xff]
      %v307 = vld [vmem:[%s300 + $0x10] sm:$0xff]
      %v308 = vld [vmem:[%s300 + $0x18] sm:$0xff]
      %v309 = vld [vmem:[%s300 + $0x20] sm:$0xff]
      %v310 = vld [vmem:[%s300 + $0x28] sm:$0xff]
      %v311 = vld [vmem:[%s300 + $0x30] sm:$0xff]
      %v312 = vld [vmem:[%s300 + $0x38] sm:$0xff]
      %v313 = vld [vmem:[%s300 + $0x40] sm:$0xff]
      %v314 = vld [vmem:[%s300 + $0x48] sm:$0xff]
      %v315 = vld [vmem:[%s300 + $0x50] sm:$0xff]
      %v316 = vld [vmem:[%s300 + $0x58] sm:$0xff]
      %v317 = vld [vmem:[%s300 + $0x60] sm:$0xff]
      %v318 = vld [vmem:[%s300 + $0x68] sm:$0xff]
      %v319 = vld [vmem:[%s300 + $0x70] sm:$0xff]
      %v320 = vld [vmem:[%s300 + $0x78] sm:$0xff]
      %v321 = vld [vmem:[%s300 + $0x80] sm:$0xff]
      %v322 = vld [vmem:[%s300 + $0x88] sm:$0xff]
      %v323 = vld [vmem:[%s300 + $0x90] sm:$0xff]
      %v324 = vld [vmem:[%s300 + $0x98] sm:$0xff]
      %v325 = vld [vmem:[%s300 + $0xa0] sm:$0xff]
      %v326 = vld [vmem:[%s300 + $0xa8] sm:$0xff]
      %v327 = vld [vmem:[%s300 + $0xb0] sm:$0xff]
      %v328 = vld [vmem:[%s300 + $0xb8] sm:$0xff]
      %v329 = vld [vmem:[%s1] sm:$0xf]
      %v330 = vld [vmem:[%s1 + $0x4] sm:$0xf]
      %v331 = vld [vmem:[%s1 + $0x8] sm:$0xf]
      %v332 = vld [vmem:[%s1 + $0xc] sm:$0xf]
      %v333 = vld [vmem:[%s1 + $0x10] sm:$0xf]
      %v334 = vld [vmem:[%s1 + $0x14] sm:$0xf]
      %v335 = vld [vmem:[%s1 + $0x18] sm:$0xf]
      %v336 = vld [vmem:[%s1 + $0x1c] sm:$0xf]
      %v337 = vld [vmem:[%s1 + $0x20] sm:$0xf]
      %v338 = vld [vmem:[%s1 + $0x24] sm:$0xf]
      %v339 = vld [vmem:[%s1 + $0x28] sm:$0xf]
      %v340 = vld [vmem:[%s1 + $0x2c] sm:$0xf]
      %v341 = vld [vmem:[%s1 + $0x30] sm:$0xf]
      %v342 = vld [vmem:[%s1 + $0x34] sm:$0xf]
      %v343 = vld [vmem:[%s1 + $0x38] sm:$0xf]
      %v344 = vld [vmem:[%s1 + $0x3c] sm:$0xf]
      %v345 = vld [vmem:[%s1 + $0x40] sm:$0xf]
      %v346 = vld [vmem:[%s1 + $0x44] sm:$0xf]
      %v347 = vld [vmem:[%s1 + $0x48] sm:$0xf]
      %v348 = vld [vmem:[%s1 + $0x4c] sm:$0xf]
      %v349 = vld [vmem:[%s1 + $0x50] sm:$0xf]
      %v350 = vld [vmem:[%s1 + $0x54] sm:$0xf]
      %v351 = vld [vmem:[%s1 + $0x58] sm:$0xf]
      %v352 = vld [vmem:[%s1 + $0x5c] sm:$0xf]
      %v377 = vunpack.c.l.b16 %v305
      %v378 = vunpack.c.h.b16 %v305
      %v379 = vunpack.c.l.b16 %v306
      %v380 = vunpack.c.h.b16 %v306
      %v381 = vunpack.c.l.b16 %v307
      %v382 = vunpack.c.h.b16 %v307
      %v383 = vunpack.c.l.b16 %v308
      %v384 = vunpack.c.h.b16 %v308
      %v385 = vunpack.c.l.b16 %v309
      %v386 = vunpack.c.h.b16 %v309
      %v387 = vunpack.c.l.b16 %v310
      %v388 = vunpack.c.h.b16 %v310
      %v389 = vunpack.c.l.b16 %v311
      %v390 = vunpack.c.h.b16 %v311
      %v391 = vunpack.c.l.b16 %v312
      %v392 = vunpack.c.h.b16 %v312
      %v393 = vunpack.c.l.b16 %v313
      %v394 = vunpack.c.h.b16 %v313
      %v395 = vunpack.c.l.b16 %v314
      %v396 = vunpack.c.h.b16 %v314
      %v397 = vunpack.c.l.b16 %v315
      %v398 = vunpack.c.h.b16 %v315
      %v399 = vunpack.c.l.b16 %v316
      %v400 = vunpack.c.h.b16 %v316
      %v401 = vunpack.c.l.b16 %v317
      %v402 = vunpack.c.h.b16 %v317
      %v403 = vunpack.c.l.b16 %v318
      %v404 = vunpack.c.h.b16 %v318
      %v405 = vunpack.c.l.b16 %v319
      %v406 = vunpack.c.h.b16 %v319
      %v407 = vunpack.c.l.b16 %v320
      %v408 = vunpack.c.h.b16 %v320
      %v409 = vunpack.c.l.b16 %v321
      %v410 = vunpack.c.h.b16 %v321
      %v411 = vunpack.c.l.b16 %v322
      %v412 = vunpack.c.h.b16 %v322
      %v413 = vunpack.c.l.b16 %v323
      %v414 = vunpack.c.h.b16 %v323
      %v415 = vunpack.c.l.b16 %v324
      %v416 = vunpack.c.h.b16 %v324
      %v417 = vunpack.c.l.b16 %v325
      %v418 = vunpack.c.h.b16 %v325
      %v419 = vunpack.c.l.b16 %v326
      %v420 = vunpack.c.h.b16 %v326
      %v421 = vunpack.c.l.b16 %v327
      %v422 = vunpack.c.h.b16 %v327
      %v423 = vunpack.c.l.b16 %v328
      %v424 = vunpack.c.h.b16 %v328
      %v425 = vpack.c.b16 %v379, %v377
      %v426 = vpack.c.b16 %v380, %v378
      %v427 = vpack.c.b16 %v383, %v381
      %v428 = vpack.c.b16 %v384, %v382
      %v429 = vpack.c.b16 %v387, %v385
      %v430 = vpack.c.b16 %v388, %v386
      %v431 = vpack.c.b16 %v391, %v389
      %v432 = vpack.c.b16 %v392, %v390
      %v433 = vpack.c.b16 %v395, %v393
      %v434 = vpack.c.b16 %v396, %v394
      %v435 = vpack.c.b16 %v399, %v397
      %v436 = vpack.c.b16 %v400, %v398
      %v437 = vpack.c.b16 %v403, %v401
      %v438 = vpack.c.b16 %v404, %v402
      %v439 = vpack.c.b16 %v407, %v405
      %v440 = vpack.c.b16 %v408, %v406
      %v441 = vpack.c.b16 %v411, %v409
      %v442 = vpack.c.b16 %v412, %v410
      %v443 = vpack.c.b16 %v415, %v413
      %v444 = vpack.c.b16 %v416, %v414
      %v445 = vpack.c.b16 %v419, %v417
      %v446 = vpack.c.b16 %v420, %v418
      %v447 = vpack.c.b16 %v423, %v421
      %v448 = vpack.c.b16 %v424, %v422
      %v485 = vunpack.c.l.b16 %v329
      %v486 = vunpack.c.l.b16 %v330
      %v487 = vunpack.c.l.b16 %v331
      %v488 = vunpack.c.l.b16 %v332
      %v489 = vunpack.c.l.b16 %v333
      %v490 = vunpack.c.l.b16 %v334
      %v491 = vunpack.c.l.b16 %v335
      %v492 = vunpack.c.l.b16 %v336
      %v493 = vunpack.c.l.b16 %v337
      %v494 = vunpack.c.l.b16 %v338
      %v495 = vunpack.c.l.b16 %v339
      %v496 = vunpack.c.l.b16 %v340
      %v497 = vunpack.c.l.b16 %v341
      %v498 = vunpack.c.l.b16 %v342
      %v499 = vunpack.c.l.b16 %v343
      %v500 = vunpack.c.l.b16 %v344
      %v501 = vunpack.c.l.b16 %v345
      %v502 = vunpack.c.l.b16 %v346
      %v503 = vunpack.c.l.b16 %v347
      %v504 = vunpack.c.l.b16 %v348
      %v505 = vunpack.c.l.b16 %v349
      %v506 = vunpack.c.l.b16 %v350
      %v507 = vunpack.c.l.b16 %v351
      %v508 = vunpack.c.l.b16 %v352
      %v509 = vpack.c.b16 %v486, %v485
      %v510 = vpack.c.b16 %v488, %v487
      %v511 = vpack.c.b16 %v490, %v489
      %v512 = vpack.c.b16 %v492, %v491
      %v513 = vpack.c.b16 %v494, %v493
      %v514 = vpack.c.b16 %v496, %v495
      %v515 = vpack.c.b16 %v498, %v497
      %v516 = vpack.c.b16 %v500, %v499
      %v517 = vpack.c.b16 %v502, %v501
      %v518 = vpack.c.b16 %v504, %v503
      %v519 = vpack.c.b16 %v506, %v505
      %v520 = vpack.c.b16 %v508, %v507
      %vm533 = vcmask 523264
      %v535 = vsel %vm533, %v426, 0
      %v538 = vsel %vm533, %v428, 0
      %v541 = vsel %vm533, %v430, 0
      %v544 = vsel %vm533, %v432, 0
      %v547 = vsel %vm533, %v434, 0
      %v550 = vsel %vm533, %v436, 0
      %v553 = vsel %vm533, %v438, 0
      %v556 = vsel %vm533, %v440, 0
      %v559 = vsel %vm533, %v442, 0
      %v562 = vsel %vm533, %v444, 0
      %v565 = vsel %vm533, %v446, 0
      %v568 = vsel %vm533, %v448, 0
      %570 = vmatprep.subr.bf16.mxu0 0
      %571 = vmatpush1.bf16.msra.mxu0 %v509
      %572 = vmatprep.subr.bf16.mxu0 0
      %573 = vmatpush1.bf16.msra.mxu0 %v510
      %574 = vmatprep.subr.bf16.mxu0 0
      %575 = vmatpush1.bf16.msra.mxu0 %v511
      %576 = vmatprep.subr.bf16.mxu0 0
      %577 = vmatpush1.bf16.msra.mxu0 %v512
      %578 = vmatprep.subr.bf16.mxu0 0
      %579 = vmatpush1.bf16.msra.mxu0 %v513
      %580 = vmatprep.subr.bf16.mxu0 0
      %581 = vmatpush1.bf16.msra.mxu0 %v514
      %582 = vmatprep.subr.bf16.mxu0 0
      %583 = vmatpush1.bf16.msra.mxu0 %v515
      %584 = vmatprep.subr.bf16.mxu0 0
      %585 = vmatpush1.bf16.msra.mxu0 %v516
      %586 = vmatprep.subr.bf16.mxu0 0
      %587 = vmatpush1.bf16.msra.mxu0 %v517
      %588 = vmatprep.subr.bf16.mxu0 0
      %589 = vmatpush1.bf16.msra.mxu0 %v518
      %590 = vmatprep.subr.bf16.mxu0 0
      %591 = vmatpush1.bf16.msra.mxu0 %v519
      %592 = vmatprep.subr.bf16.mxu0 0
      %593 = vmatpush1.bf16.msra.mxu0 %v520
      %594 = vmatprep.subr.bf16.mxu0 0
      %595 = vmatpush1.bf16.msra.mxu0 0
      %596 = vmatprep.subr.bf16.mxu0 0
      %597 = vmatpush1.bf16.msra.mxu0 0
      %598 = vmatprep.subr.bf16.mxu0 0
      %599 = vmatpush1.bf16.msra.mxu0 0
      %600 = vmatprep.subr.bf16.mxu0 0
      %601 = vmatpush1.bf16.msra.mxu0 0
      %602 = vmatprep.mubr.bf16.mxu0 %v535
      %603 = vmatmul.mubr.bf16.gmra.mrb[0].mxu0 %v425
      %v604 = vpop.f32.mrb[0].mxu0
      %v605 = vadd.f32 0.0, %v604
      %v606 = vpop.f32.mrb[0].mxu0
      %v607 = vpop.f32.mrb[0].mxu0
      %v608 = vadd.f32 0.0, %v607
      %v609 = vpop.f32.mrb[0].mxu0
      %610 = vmatprep.mubr.bf16.mxu0 %v538
      %611 = vmatmul.mubr.bf16.gmra.mrb[0].mxu0 %v427
      %v612 = vpop.f32.mrb[0].mxu0
      %v613 = vadd.f32 0.0, %v612
      %v614 = vpop.f32.mrb[0].mxu0
      %v615 = vpop.f32.mrb[0].mxu0
      %v616 = vadd.f32 0.0, %v615
      %v617 = vpop.f32.mrb[0].mxu0
      %618 = vmatprep.mubr.bf16.mxu0 %v541
      %619 = vmatmul.mubr.bf16.gmra.mrb[0].mxu0 %v429
      %v620 = vpop.f32.mrb[0].mxu0
      %v621 = vadd.f32 0.0, %v620
      %v622 = vpop.f32.mrb[0].mxu0
      %v623 = vpop.f32.mrb[0].mxu0
      %v624 = vadd.f32 0.0, %v623
      %v625 = vpop.f32.mrb[0].mxu0
      %626 = vmatprep.mubr.bf16.mxu0 %v544
      %627 = vmatmul.mubr.bf16.gmra.mrb[0].mxu0 %v431
      %v628 = vpop.f32.mrb[0].mxu0
      %v629 = vadd.f32 0.0, %v628
      %v630 = vpop.f32.mrb[0].mxu0
      %v631 = vpop.f32.mrb[0].mxu0
      %v632 = vadd.f32 0.0, %v631
      %v633 = vpop.f32.mrb[0].mxu0
      %634 = vmatprep.mubr.bf16.mxu0 %v547
      %635 = vmatmul.mubr.bf16.gmra.mrb[0].mxu0 %v433
      %v636 = vpop.f32.mrb[0].mxu0
      %v637 = vadd.f32 0.0, %v636
      %v638 = vpop.f32.mrb[0].mxu0
      %v639 = vpop.f32.mrb[0].mxu0
      %v640 = vadd.f32 0.0, %v639
      %v641 = vpop.f32.mrb[0].mxu0
      %642 = vmatprep.mubr.bf16.mxu0 %v550
      %643 = vmatmul.mubr.bf16.gmra.mrb[0].mxu0 %v435
      %v644 = vpop.f32.mrb[0].mxu0
      %v645 = vadd.f32 0.0, %v644
      %v646 = vpop.f32.mrb[0].mxu0
      %v647 = vpop.f32.mrb[0].mxu0
      %v648 = vadd.f32 0.0, %v647
      %v649 = vpop.f32.mrb[0].mxu0
      %650 = vmatprep.mubr.bf16.mxu0 %v553
      %651 = vmatmul.mubr.bf16.gmra.mrb[0].mxu0 %v437
      %v652 = vpop.f32.mrb[0].mxu0
      %v653 = vadd.f32 0.0, %v652
      %v654 = vpop.f32.mrb[0].mxu0
      %v655 = vpop.f32.mrb[0].mxu0
      %v656 = vadd.f32 0.0, %v655
      %v657 = vpop.f32.mrb[0].mxu0
      %658 = vmatprep.mubr.bf16.mxu0 %v556
      %659 = vmatmul.mubr.bf16.gmra.mrb[0].mxu0 %v439
      %v660 = vpop.f32.mrb[0].mxu0
      %v661 = vadd.f32 0.0, %v660
      %v662 = vpop.f32.mrb[0].mxu0
      %v663 = vpop.f32.mrb[0].mxu0
      %v664 = vadd.f32 0.0, %v663
      %v665 = vpop.f32.mrb[0].mxu0
      %666 = vmatprep.mubr.bf16.mxu0 %v559
      %667 = vmatmul.mubr.bf16.gmra.mrb[0].mxu0 %v441
      %v668 = vpop.f32.mrb[0].mxu0
      %v669 = vadd.f32 0.0, %v668
      %v670 = vpop.f32.mrb[0].mxu0
      %v671 = vpop.f32.mrb[0].mxu0
      %v672 = vadd.f32 0.0, %v671
      %v673 = vpop.f32.mrb[0].mxu0
      %674 = vmatprep.mubr.bf16.mxu0 %v562
      %675 = vmatmul.mubr.bf16.gmra.mrb[0].mxu0 %v443
      %v676 = vpop.f32.mrb[0].mxu0
      %v677 = vadd.f32 0.0, %v676
      %v678 = vpop.f32.mrb[0].mxu0
      %v679 = vpop.f32.mrb[0].mxu0
      %v680 = vadd.f32 0.0, %v679
      %v681 = vpop.f32.mrb[0].mxu0
      %682 = vmatprep.mubr.bf16.mxu0 %v565
      %683 = vmatmul.mubr.bf16.gmra.mrb[0].mxu0 %v445
      %v684 = vpop.f32.mrb[0].mxu0
      %v685 = vadd.f32 0.0, %v684
      %v686 = vpop.f32.mrb[0].mxu0
      %v687 = vpop.f32.mrb[0].mxu0
      %v688 = vadd.f32 0.0, %v687
      %v689 = vpop.f32.mrb[0].mxu0
      %690 = vmatprep.mubr.bf16.mxu0 %v568
      %691 = vmatmul.mubr.bf16.gmra.mrb[0].mxu0 %v447
      %v692 = vpop.f32.mrb[0].mxu0
      %v693 = vadd.f32 0.0, %v692
      %v694 = vpop.f32.mrb[0].mxu0
      %v695 = vpop.f32.mrb[0].mxu0
      %v696 = vadd.f32 0.0, %v695
      %v697 = vpop.f32.mrb[0].mxu0
      %698 = vdwg.mxu0
      %v699 = vmax.f32 %v605, %v653
      %v700 = vmax.f32 %v608, %v656
      %v701 = vmax.f32 %v613, %v661
      %v702 = vmax.f32 %v616, %v664
      %v703 = vmax.f32 %v621, %v669
      %v704 = vmax.f32 %v624, %v672
      %v705 = vmax.f32 %v629, %v677
      %v706 = vmax.f32 %v632, %v680
      %v707 = vmax.f32 %v637, %v685
      %v708 = vmax.f32 %v640, %v688
      %v709 = vmax.f32 %v645, %v693
      %v710 = vmax.f32 %v648, %v696
      %v711 = vmax.f32 %v699, 0.0
      %v712 = vmax.f32 %v700, 0.0
      %v713 = vmax.f32 %v701, 0.0
      %v714 = vmax.f32 %v702, 0.0
      %v715 = vmax.f32 %v703, 0.0
      %v716 = vmax.f32 %v704, 0.0
      %v717 = vmax.f32 %v705, 0.0
      %v718 = vmax.f32 %v706, 0.0
      %v719 = vmax.f32 %v707, 0.0
      %v720 = vmax.f32 %v708, 0.0
      %v721 = vmax.f32 %v709, 0.0
      %v722 = vmax.f32 %v710, 0.0
      %v723 = vmax.f32 %v711, %v715
      %v724 = vmax.f32 %v712, %v716
      %v725 = vmax.f32 %v713, %v717
      %v726 = vmax.f32 %v714, %v718
      %v727 = vmax.f32 %v723, %v719
      %v728 = vmax.f32 %v724, %v720
      %v729 = vmax.f32 %v725, %v721
      %v730 = vmax.f32 %v726, %v722
      %vm731 = vcmask 261120
      %732 = vst.msk [vmem:[#allocation2] sm:$0xff] %vm731, %v727
      %733 = vst.msk [vmem:[#allocation2 + $0x8] sm:$0xff] %vm731, %v728
      %734 = vst.msk [vmem:[#allocation2 + $0x10] sm:$0xff] %vm731, %v729
      %735 = vst.msk [vmem:[#allocation2 + $0x18] sm:$0xff] %vm731, %v730
      %v736 = vld [vmem:[#allocation2] sm:$0xff]
      %v737 = vld [vmem:[#allocation2 + $0x8] sm:$0xff]
      %v738 = vld [vmem:[#allocation2 + $0x10] sm:$0xf]
      %v739 = vpack.c.bf16 %v737, %v736
      %v740 = vpack.c.bf16 %v738, %v738
      %v741 = vld [vmem:[%s2] sm:$0xf]
      %v742 = vld [vmem:[%s2 + $0x4] sm:$0xf]
      %v743 = vld [vmem:[%s2 + $0x8] sm:$0xf]
      %v744 = vld [vmem:[%s2 + $0xc] sm:$0xf]
      %v745 = vld [vmem:[#allocation2 + $0x1] sm:$0xff]
      %v746 = vld [vmem:[#allocation2 + $0x9] sm:$0xff]
      %v747 = vld [vmem:[#allocation2 + $0x11] sm:$0xf]
      %v748 = vpack.c.bf16 %v746, %v745
      %v749 = vpack.c.bf16 %v747, %v747
      %s750 = scalar_lea.vmem %s2, 16
      %v751 = vld [vmem:[%s750] sm:$0xf]
      %v752 = vld [vmem:[%s750 + $0x4] sm:$0xf]
      %v753 = vld [vmem:[%s750 + $0x8] sm:$0xf]
      %v754 = vld [vmem:[%s750 + $0xc] sm:$0xf]
      %v759 = vunpack.c.l.b16 %v751
      %v760 = vunpack.c.l.b16 %v752
      %v761 = vunpack.c.l.b16 %v753
      %v762 = vunpack.c.l.b16 %v754
      %v763 = vpack.c.b16 %v760, %v759
      %v764 = vpack.c.b16 %v762, %v761
      %v768 = vsel %vm731, %v748, 0
      %v771 = vsel %vm731, %v749, 0
      %773 = vmatprep.subr.bf16.mxu0 0
      %774 = vmatpush1.bf16.msra.mxu0 %v763
      %775 = vmatprep.subr.bf16.mxu0 0
      %776 = vmatpush1.bf16.msra.mxu0 %v764
      %777 = vmatprep.subr.bf16.mxu0 0
      %778 = vmatpush1.bf16.msra.mxu0 0
      %779 = vmatprep.subr.bf16.mxu0 0
      %780 = vmatpush1.bf16.msra.mxu0 0
      %781 = vmatprep.subr.bf16.mxu0 0
      %782 = vmatpush1.bf16.msra.mxu0 0
      %783 = vmatprep.subr.bf16.mxu0 0
      %784 = vmatpush1.bf16.msra.mxu0 0
      %785 = vmatprep.subr.bf16.mxu0 0
      %786 = vmatpush1.bf16.msra.mxu0 0
      %787 = vmatprep.subr.bf16.mxu0 0
      %788 = vmatpush1.bf16.msra.mxu0 0
      %789 = vmatprep.subr.bf16.mxu0 0
      %790 = vmatpush1.bf16.msra.mxu0 0
      %791 = vmatprep.subr.bf16.mxu0 0
      %792 = vmatpush1.bf16.msra.mxu0 0
      %793 = vmatprep.subr.bf16.mxu0 0
      %794 = vmatpush1.bf16.msra.mxu0 0
      %795 = vmatprep.subr.bf16.mxu0 0
      %796 = vmatpush1.bf16.msra.mxu0 0
      %797 = vmatprep.subr.bf16.mxu0 0
      %798 = vmatpush1.bf16.msra.mxu0 0
      %799 = vmatprep.subr.bf16.mxu0 0
      %800 = vmatpush1.bf16.msra.mxu0 0
      %801 = vmatprep.subr.bf16.mxu0 0
      %802 = vmatpush1.bf16.msra.mxu0 0
      %803 = vmatprep.subr.bf16.mxu0 0
      %804 = vmatpush1.bf16.msra.mxu0 0
      %805 = vmatprep.mubr.bf16.mxu0 0
      %806 = vmatmul.mubr.bf16.gmra.mrb[0].mxu0 %v768
      %v807 = vpop.f32.mrb[0].mxu0
      %v808 = vadd.f32 0.0, %v807
      %v809 = vpop.f32.mrb[0].mxu0
      %v810 = vpop.f32.mrb[0].mxu0
      %v811 = vadd.f32 0.0, %v810
      %v812 = vpop.f32.mrb[0].mxu0
      %813 = vmatprep.mubr.bf16.mxu0 0
      %814 = vmatmul.mubr.bf16.gmra.mrb[0].mxu0 %v771
      %v815 = vpop.f32.mrb[0].mxu0
      %v816 = vadd.f32 0.0, %v815
      %v817 = vpop.f32.mrb[0].mxu0
      %v818 = vpop.f32.mrb[0].mxu0
      %v819 = vpop.f32.mrb[0].mxu0
      %820 = vdwg.mxu0
      %v825 = vunpack.c.l.b16 %v741
      %v826 = vunpack.c.l.b16 %v742
      %v827 = vunpack.c.l.b16 %v743
      %v828 = vunpack.c.l.b16 %v744
      %v829 = vpack.c.b16 %v826, %v825
      %v830 = vpack.c.b16 %v828, %v827
      %v834 = vsel %vm731, %v739, 0
      %v837 = vsel %vm731, %v740, 0
      %839 = vmatprep.subr.bf16.mxu0 0
      %840 = vmatpush1.bf16.msra.mxu0 %v829
      %841 = vmatprep.subr.bf16.mxu0 0
      %842 = vmatpush1.bf16.msra.mxu0 %v830
      %843 = vmatprep.subr.bf16.mxu0 0
      %844 = vmatpush1.bf16.msra.mxu0 0
      %845 = vmatprep.subr.bf16.mxu0 0
      %846 = vmatpush1.bf16.msra.mxu0 0
      %847 = vmatprep.subr.bf16.mxu0 0
      %848 = vmatpush1.bf16.msra.mxu0 0
      %849 = vmatprep.subr.bf16.mxu0 0
      %850 = vmatpush1.bf16.msra.mxu0 0
      %851 = vmatprep.subr.bf16.mxu0 0
      %852 = vmatpush1.bf16.msra.mxu0 0
      %853 = vmatprep.subr.bf16.mxu0 0
      %854 = vmatpush1.bf16.msra.mxu0 0
      %855 = vmatprep.subr.bf16.mxu0 0
      %856 = vmatpush1.bf16.msra.mxu0 0
      %857 = vmatprep.subr.bf16.mxu0 0
      %858 = vmatpush1.bf16.msra.mxu0 0
      %859 = vmatprep.subr.bf16.mxu0 0
      %860 = vmatpush1.bf16.msra.mxu0 0
      %861 = vmatprep.subr.bf16.mxu0 0
      %862 = vmatpush1.bf16.msra.mxu0 0
      %863 = vmatprep.subr.bf16.mxu0 0
      %864 = vmatpush1.bf16.msra.mxu0 0
      %865 = vmatprep.subr.bf16.mxu0 0
      %866 = vmatpush1.bf16.msra.mxu0 0
      %867 = vmatprep.subr.bf16.mxu0 0
      %868 = vmatpush1.bf16.msra.mxu0 0
      %869 = vmatprep.subr.bf16.mxu0 0
      %870 = vmatpush1.bf16.msra.mxu0 0
      %871 = vmatprep.mubr.bf16.mxu0 0
      %872 = vmatmul.mubr.bf16.gmra.mrb[0].mxu0 %v834
      %v873 = vpop.f32.mrb[0].mxu0
      %v874 = vadd.f32 %v808, %v873
      %v875 = vpop.f32.mrb[0].mxu0
      %v876 = vpop.f32.mrb[0].mxu0
      %v877 = vadd.f32 %v811, %v876
      %v878 = vpop.f32.mrb[0].mxu0
      %879 = vmatprep.mubr.bf16.mxu0 0
      %880 = vmatmul.mubr.bf16.gmra.mrb[0].mxu0 %v837
      %v881 = vpop.f32.mrb[0].mxu0
      %v882 = vadd.f32 %v816, %v881
      %v883 = vpop.f32.mrb[0].mxu0
      %v884 = vpop.f32.mrb[0].mxu0
      %v885 = vpop.f32.mrb[0].mxu0
      %886 = vdwg.mxu0
      %v887 = vld [vmem:[#allocation2 + $0x2] sm:$0xff]
      %v888 = vld [vmem:[#allocation2 + $0xa] sm:$0xff]
      %v889 = vld [vmem:[#allocation2 + $0x12] sm:$0xf]
      %v890 = vpack.c.bf16 %v888, %v887
      %v891 = vpack.c.bf16 %v889, %v889
      %s892 = scalar_lea.vmem %s2, 32
      %v893 = vld [vmem:[%s892] sm:$0xf]
      %v894 = vld [vmem:[%s892 + $0x4] sm:$0xf]
      %v895 = vld [vmem:[%s892 + $0x8] sm:$0xf]
      %v896 = vld [vmem:[%s892 + $0xc] sm:$0xf]
      %v901 = vunpack.c.l.b16 %v893
      %v902 = vunpack.c.l.b16 %v894
      %v903 = vunpack.c.l.b16 %v895
      %v904 = vunpack.c.l.b16 %v896
      %v905 = vpack.c.b16 %v902, %v901
      %v906 = vpack.c.b16 %v904, %v903
      %v910 = vsel %vm731, %v890, 0
      %v913 = vsel %vm731, %v891, 0
      %915 = vmatprep.subr.bf16.mxu0 0
      %916 = vmatpush1.bf16.msra.mxu0 %v905
      %917 = vmatprep.subr.bf16.mxu0 0
      %918 = vmatpush1.bf16.msra.mxu0 %v906
      %919 = vmatprep.subr.bf16.mxu0 0
      %920 = vmatpush1.bf16.msra.mxu0 0
      %921 = vmatprep.subr.bf16.mxu0 0
      %922 = vmatpush1.bf16.msra.mxu0 0
      %923 = vmatprep.subr.bf16.mxu0 0
      %924 = vmatpush1.bf16.msra.mxu0 0
      %925 = vmatprep.subr.bf16.mxu0 0
      %926 = vmatpush1.bf16.msra.mxu0 0
      %927 = vmatprep.subr.bf16.mxu0 0
      %928 = vmatpush1.bf16.msra.mxu0 0
      %929 = vmatprep.subr.bf16.mxu0 0
      %930 = vmatpush1.bf16.msra.mxu0 0
      %931 = vmatprep.subr.bf16.mxu0 0
      %932 = vmatpush1.bf16.msra.mxu0 0
      %933 = vmatprep.subr.bf16.mxu0 0
      %934 = vmatpush1.bf16.msra.mxu0 0
      %935 = vmatprep.subr.bf16.mxu0 0
      %936 = vmatpush1.bf16.msra.mxu0 0
      %937 = vmatprep.subr.bf16.mxu0 0
      %938 = vmatpush1.bf16.msra.mxu0 0
      %939 = vmatprep.subr.bf16.mxu0 0
      %940 = vmatpush1.bf16.msra.mxu0 0
      %941 = vmatprep.subr.bf16.mxu0 0
      %942 = vmatpush1.bf16.msra.mxu0 0
      %943 = vmatprep.subr.bf16.mxu0 0
      %944 = vmatpush1.bf16.msra.mxu0 0
      %945 = vmatprep.subr.bf16.mxu0 0
      %946 = vmatpush1.bf16.msra.mxu0 0
      %947 = vmatprep.mubr.bf16.mxu0 0
      %948 = vmatmul.mubr.bf16.gmra.mrb[0].mxu0 %v910
      %v949 = vpop.f32.mrb[0].mxu0
      %v950 = vadd.f32 0.0, %v949
      %v951 = vpop.f32.mrb[0].mxu0
      %v952 = vpop.f32.mrb[0].mxu0
      %v953 = vadd.f32 0.0, %v952
      %v954 = vpop.f32.mrb[0].mxu0
      %955 = vmatprep.mubr.bf16.mxu0 0
      %956 = vmatmul.mubr.bf16.gmra.mrb[0].mxu0 %v913
      %v957 = vpop.f32.mrb[0].mxu0
      %v958 = vadd.f32 0.0, %v957
      %v959 = vpop.f32.mrb[0].mxu0
      %v960 = vpop.f32.mrb[0].mxu0
      %v961 = vpop.f32.mrb[0].mxu0
      %962 = vdwg.mxu0
      %v963 = vadd.f32 %v874, %v950
      %v964 = vadd.f32 %v877, %v953
      %v965 = vadd.f32 %v882, %v958
      %v966 = vld [vmem:[#allocation2 + $0x3] sm:$0xff]
      %v967 = vld [vmem:[#allocation2 + $0xb] sm:$0xff]
      %v968 = vld [vmem:[#allocation2 + $0x13] sm:$0xf]
      %v969 = vpack.c.bf16 %v967, %v966
      %v970 = vpack.c.bf16 %v968, %v968
      %s971 = scalar_lea.vmem %s2, 48
      %v972 = vld [vmem:[%s971] sm:$0xf]
      %v973 = vld [vmem:[%s971 + $0x4] sm:$0xf]
      %v974 = vld [vmem:[%s971 + $0x8] sm:$0xf]
      %v975 = vld [vmem:[%s971 + $0xc] sm:$0xf]
      %v980 = vunpack.c.l.b16 %v972
      %v981 = vunpack.c.l.b16 %v973
      %v982 = vunpack.c.l.b16 %v974
      %v983 = vunpack.c.l.b16 %v975
      %v984 = vpack.c.b16 %v981, %v980
      %v985 = vpack.c.b16 %v983, %v982
      %v989 = vsel %vm731, %v969, 0
      %v992 = vsel %vm731, %v970, 0
      %994 = vmatprep.subr.bf16.mxu0 0
      %995 = vmatpush1.bf16.msra.mxu0 %v984
      %996 = vmatprep.subr.bf16.mxu0 0
      %997 = vmatpush1.bf16.msra.mxu0 %v985
      %998 = vmatprep.subr.bf16.mxu0 0
      %999 = vmatpush1.bf16.msra.mxu0 0
      %1000 = vmatprep.subr.bf16.mxu0 0
      %1001 = vmatpush1.bf16.msra.mxu0 0
      %1002 = vmatprep.subr.bf16.mxu0 0
      %1003 = vmatpush1.bf16.msra.mxu0 0
      %1004 = vmatprep.subr.bf16.mxu0 0
      %1005 = vmatpush1.bf16.msra.mxu0 0
      %1006 = vmatprep.subr.bf16.mxu0 0
      %1007 = vmatpush1.bf16.msra.mxu0 0
      %1008 = vmatprep.subr.bf16.mxu0 0
      %1009 = vmatpush1.bf16.msra.mxu0 0
      %1010 = vmatprep.subr.bf16.mxu0 0
      %1011 = vmatpush1.bf16.msra.mxu0 0
      %1012 = vmatprep.subr.bf16.mxu0 0
      %1013 = vmatpush1.bf16.msra.mxu0 0
      %1014 = vmatprep.subr.bf16.mxu0 0
      %1015 = vmatpush1.bf16.msra.mxu0 0
      %1016 = vmatprep.subr.bf16.mxu0 0
      %1017 = vmatpush1.bf16.msra.mxu0 0
      %1018 = vmatprep.subr.bf16.mxu0 0
      %1019 = vmatpush1.bf16.msra.mxu0 0
      %1020 = vmatprep.subr.bf16.mxu0 0
      %1021 = vmatpush1.bf16.msra.mxu0 0
      %1022 = vmatprep.subr.bf16.mxu0 0
      %1023 = vmatpush1.bf16.msra.mxu0 0
      %1024 = vmatprep.subr.bf16.mxu0 0
      %1025 = vmatpush1.bf16.msra.mxu0 0
      %1026 = vmatprep.mubr.bf16.mxu0 0
      %1027 = vmatmul.mubr.bf16.gmra.mrb[0].mxu0 %v989
      %v1028 = vpop.f32.mrb[0].mxu0
      %v1029 = vadd.f32 0.0, %v1028
      %v1030 = vpop.f32.mrb[0].mxu0
      %v1031 = vpop.f32.mrb[0].mxu0
      %v1032 = vadd.f32 0.0, %v1031
      %v1033 = vpop.f32.mrb[0].mxu0
      %1034 = vmatprep.mubr.bf16.mxu0 0
      %1035 = vmatmul.mubr.bf16.gmra.mrb[0].mxu0 %v992
      %v1036 = vpop.f32.mrb[0].mxu0
      %v1037 = vadd.f32 0.0, %v1036
      %v1038 = vpop.f32.mrb[0].mxu0
      %v1039 = vpop.f32.mrb[0].mxu0
      %v1040 = vpop.f32.mrb[0].mxu0
      %1041 = vdwg.mxu0
      %v1042 = vadd.f32 %v963, %v1029
      %v1043 = vadd.f32 %v964, %v1032
      %v1044 = vadd.f32 %v965, %v1037
      %v1045 = vld [vmem:[#allocation2 + $0x4] sm:$0xff]
      %v1046 = vld [vmem:[#allocation2 + $0xc] sm:$0xff]
      %v1047 = vld [vmem:[#allocation2 + $0x14] sm:$0xf]
      %v1048 = vpack.c.bf16 %v1046, %v1045
      %v1049 = vpack.c.bf16 %v1047, %v1047
      %s1050 = scalar_lea.vmem %s2, 64
      %v1051 = vld [vmem:[%s1050] sm:$0xf]
      %v1052 = vld [vmem:[%s1050 + $0x4] sm:$0xf]
      %v1053 = vld [vmem:[%s1050 + $0x8] sm:$0xf]
      %v1054 = vld [vmem:[%s1050 + $0xc] sm:$0xf]
      %v1059 = vunpack.c.l.b16 %v1051
      %v1060 = vunpack.c.l.b16 %v1052
      %v1061 = vunpack.c.l.b16 %v1053
      %v1062 = vunpack.c.l.b16 %v1054
      %v1063 = vpack.c.b16 %v1060, %v1059
      %v1064 = vpack.c.b16 %v1062, %v1061
      %v1068 = vsel %vm731, %v1048, 0
      %v1071 = vsel %vm731, %v1049, 0
      %1073 = vmatprep.subr.bf16.mxu0 0
      %1074 = vmatpush1.bf16.msra.mxu0 %v1063
      %1075 = vmatprep.subr.bf16.mxu0 0
      %1076 = vmatpush1.bf16.msra.mxu0 %v1064
      %1077 = vmatprep.subr.bf16.mxu0 0
      %1078 = vmatpush1.bf16.msra.mxu0 0
      %1079 = vmatprep.subr.bf16.mxu0 0
      %1080 = vmatpush1.bf16.msra.mxu0 0
      %1081 = vmatprep.subr.bf16.mxu0 0
      %1082 = vmatpush1.bf16.msra.mxu0 0
      %1083 = vmatprep.subr.bf16.mxu0 0
      %1084 = vmatpush1.bf16.msra.mxu0 0
      %1085 = vmatprep.subr.bf16.mxu0 0
      %1086 = vmatpush1.bf16.msra.mxu0 0
      %1087 = vmatprep.subr.bf16.mxu0 0
      %1088 = vmatpush1.bf16.msra.mxu0 0
      %1089 = vmatprep.subr.bf16.mxu0 0
      %1090 = vmatpush1.bf16.msra.mxu0 0
      %1091 = vmatprep.subr.bf16.mxu0 0
      %1092 = vmatpush1.bf16.msra.mxu0 0
      %1093 = vmatprep.subr.bf16.mxu0 0
      %1094 = vmatpush1.bf16.msra.mxu0 0
      %1095 = vmatprep.subr.bf16.mxu0 0
      %1096 = vmatpush1.bf16.msra.mxu0 0
      %1097 = vmatprep.subr.bf16.mxu0 0
      %1098 = vmatpush1.bf16.msra.mxu0 0
      %1099 = vmatprep.subr.bf16.mxu0 0
      %1100 = vmatpush1.bf16.msra.mxu0 0
      %1101 = vmatprep.subr.bf16.mxu0 0
      %1102 = vmatpush1.bf16.msra.mxu0 0
      %1103 = vmatprep.subr.bf16.mxu0 0
      %1104 = vmatpush1.bf16.msra.mxu0 0
      %1105 = vmatprep.mubr.bf16.mxu0 0
      %1106 = vmatmul.mubr.bf16.gmra.mrb[0].mxu0 %v1068
      %v1107 = vpop.f32.mrb[0].mxu0
      %v1108 = vadd.f32 0.0, %v1107
      %v1109 = vpop.f32.mrb[0].mxu0
      %v1110 = vpop.f32.mrb[0].mxu0
      %v1111 = vadd.f32 0.0, %v1110
      %v1112 = vpop.f32.mrb[0].mxu0
      %1113 = vmatprep.mubr.bf16.mxu0 0
      %1114 = vmatmul.mubr.bf16.gmra.mrb[0].mxu0 %v1071
      %v1115 = vpop.f32.mrb[0].mxu0
      %v1116 = vadd.f32 0.0, %v1115
      %v1117 = vpop.f32.mrb[0].mxu0
      %v1118 = vpop.f32.mrb[0].mxu0
      %v1119 = vpop.f32.mrb[0].mxu0
      %1120 = vdwg.mxu0
      %v1121 = vadd.f32 %v1042, %v1108
      %v1122 = vadd.f32 %v1043, %v1111
      %v1123 = vadd.f32 %v1044, %v1116
      %v1124 = vld [vmem:[#allocation2 + $0x5] sm:$0xff]
      %v1125 = vld [vmem:[#allocation2 + $0xd] sm:$0xff]
      %v1126 = vld [vmem:[#allocation2 + $0x15] sm:$0xf]
      %v1127 = vpack.c.bf16 %v1125, %v1124
      %v1128 = vpack.c.bf16 %v1126, %v1126
      %s1129 = scalar_lea.vmem %s2, 80
      %v1130 = vld [vmem:[%s1129] sm:$0xf]
      %v1131 = vld [vmem:[%s1129 + $0x4] sm:$0xf]
      %v1132 = vld [vmem:[%s1129 + $0x8] sm:$0xf]
      %v1133 = vld [vmem:[%s1129 + $0xc] sm:$0xf]
      %v1138 = vunpack.c.l.b16 %v1130
      %v1139 = vunpack.c.l.b16 %v1131
      %v1140 = vunpack.c.l.b16 %v1132
      %v1141 = vunpack.c.l.b16 %v1133
      %v1142 = vpack.c.b16 %v1139, %v1138
      %v1143 = vpack.c.b16 %v1141, %v1140
      %v1147 = vsel %vm731, %v1127, 0
      %v1150 = vsel %vm731, %v1128, 0
      %1152 = vmatprep.subr.bf16.mxu0 0
      %1153 = vmatpush1.bf16.msra.mxu0 %v1142
      %1154 = vmatprep.subr.bf16.mxu0 0
      %1155 = vmatpush1.bf16.msra.mxu0 %v1143
      %1156 = vmatprep.subr.bf16.mxu0 0
      %1157 = vmatpush1.bf16.msra.mxu0 0
      %1158 = vmatprep.subr.bf16.mxu0 0
      %1159 = vmatpush1.bf16.msra.mxu0 0
      %1160 = vmatprep.subr.bf16.mxu0 0
      %1161 = vmatpush1.bf16.msra.mxu0 0
      %1162 = vmatprep.subr.bf16.mxu0 0
      %1163 = vmatpush1.bf16.msra.mxu0 0
      %1164 = vmatprep.subr.bf16.mxu0 0
      %1165 = vmatpush1.bf16.msra.mxu0 0
      %1166 = vmatprep.subr.bf16.mxu0 0
      %1167 = vmatpush1.bf16.msra.mxu0 0
      %1168 = vmatprep.subr.bf16.mxu0 0
      %1169 = vmatpush1.bf16.msra.mxu0 0
      %1170 = vmatprep.subr.bf16.mxu0 0
      %1171 = vmatpush1.bf16.msra.mxu0 0
      %1172 = vmatprep.subr.bf16.mxu0 0
      %1173 = vmatpush1.bf16.msra.mxu0 0
      %1174 = vmatprep.subr.bf16.mxu0 0
      %1175 = vmatpush1.bf16.msra.mxu0 0
      %1176 = vmatprep.subr.bf16.mxu0 0
      %1177 = vmatpush1.bf16.msra.mxu0 0
      %1178 = vmatprep.subr.bf16.mxu0 0
      %1179 = vmatpush1.bf16.msra.mxu0 0
      %1180 = vmatprep.subr.bf16.mxu0 0
      %1181 = vmatpush1.bf16.msra.mxu0 0
      %1182 = vmatprep.subr.bf16.mxu0 0
      %1183 = vmatpush1.bf16.msra.mxu0 0
      %1184 = vmatprep.mubr.bf16.mxu0 0
      %1185 = vmatmul.mubr.bf16.gmra.mrb[0].mxu0 %v1147
      %v1186 = vpop.f32.mrb[0].mxu0
      %v1187 = vadd.f32 0.0, %v1186
      %v1188 = vpop.f32.mrb[0].mxu0
      %v1189 = vpop.f32.mrb[0].mxu0
      %v1190 = vadd.f32 0.0, %v1189
      %v1191 = vpop.f32.mrb[0].mxu0
      %1192 = vmatprep.mubr.bf16.mxu0 0
      %1193 = vmatmul.mubr.bf16.gmra.mrb[0].mxu0 %v1150
      %v1194 = vpop.f32.mrb[0].mxu0
      %v1195 = vadd.f32 0.0, %v1194
      %v1196 = vpop.f32.mrb[0].mxu0
      %v1197 = vpop.f32.mrb[0].mxu0
      %v1198 = vpop.f32.mrb[0].mxu0
      %1199 = vdwg.mxu0
      %v1200 = vadd.f32 %v1121, %v1187
      %v1201 = vadd.f32 %v1122, %v1190
      %v1202 = vadd.f32 %v1123, %v1195
      %v1203 = vld [vmem:[#allocation2 + $0x6] sm:$0xff]
      %v1204 = vld [vmem:[#allocation2 + $0xe] sm:$0xff]
      %v1205 = vld [vmem:[#allocation2 + $0x16] sm:$0xf]
      %v1206 = vpack.c.bf16 %v1204, %v1203
      %v1207 = vpack.c.bf16 %v1205, %v1205
      %s1208 = scalar_lea.vmem %s2, 96
      %v1209 = vld [vmem:[%s1208] sm:$0xf]
      %v1210 = vld [vmem:[%s1208 + $0x4] sm:$0xf]
      %v1211 = vld [vmem:[%s1208 + $0x8] sm:$0xf]
      %v1212 = vld [vmem:[%s1208 + $0xc] sm:$0xf]
      %v1217 = vunpack.c.l.b16 %v1209
      %v1218 = vunpack.c.l.b16 %v1210
      %v1219 = vunpack.c.l.b16 %v1211
      %v1220 = vunpack.c.l.b16 %v1212
      %v1221 = vpack.c.b16 %v1218, %v1217
      %v1222 = vpack.c.b16 %v1220, %v1219
      %v1226 = vsel %vm731, %v1206, 0
      %v1229 = vsel %vm731, %v1207, 0
      %1231 = vmatprep.subr.bf16.mxu0 0
      %1232 = vmatpush1.bf16.msra.mxu0 %v1221
      %1233 = vmatprep.subr.bf16.mxu0 0
      %1234 = vmatpush1.bf16.msra.mxu0 %v1222
      %1235 = vmatprep.subr.bf16.mxu0 0
      %1236 = vmatpush1.bf16.msra.mxu0 0
      %1237 = vmatprep.subr.bf16.mxu0 0
      %1238 = vmatpush1.bf16.msra.mxu0 0
      %1239 = vmatprep.subr.bf16.mxu0 0
      %1240 = vmatpush1.bf16.msra.mxu0 0
      %1241 = vmatprep.subr.bf16.mxu0 0
      %1242 = vmatpush1.bf16.msra.mxu0 0
      %1243 = vmatprep.subr.bf16.mxu0 0
      %1244 = vmatpush1.bf16.msra.mxu0 0
      %1245 = vmatprep.subr.bf16.mxu0 0
      %1246 = vmatpush1.bf16.msra.mxu0 0
      %1247 = vmatprep.subr.bf16.mxu0 0
      %1248 = vmatpush1.bf16.msra.mxu0 0
      %1249 = vmatprep.subr.bf16.mxu0 0
      %1250 = vmatpush1.bf16.msra.mxu0 0
      %1251 = vmatprep.subr.bf16.mxu0 0
      %1252 = vmatpush1.bf16.msra.mxu0 0
      %1253 = vmatprep.subr.bf16.mxu0 0
      %1254 = vmatpush1.bf16.msra.mxu0 0
      %1255 = vmatprep.subr.bf16.mxu0 0
      %1256 = vmatpush1.bf16.msra.mxu0 0
      %1257 = vmatprep.subr.bf16.mxu0 0
      %1258 = vmatpush1.bf16.msra.mxu0 0
      %1259 = vmatprep.subr.bf16.mxu0 0
      %1260 = vmatpush1.bf16.msra.mxu0 0
      %1261 = vmatprep.subr.bf16.mxu0 0
      %1262 = vmatpush1.bf16.msra.mxu0 0
      %1263 = vmatprep.mubr.bf16.mxu0 0
      %1264 = vmatmul.mubr.bf16.gmra.mrb[0].mxu0 %v1226
      %v1265 = vpop.f32.mrb[0].mxu0
      %v1266 = vadd.f32 0.0, %v1265
      %v1267 = vpop.f32.mrb[0].mxu0
      %v1268 = vpop.f32.mrb[0].mxu0
      %v1269 = vadd.f32 0.0, %v1268
      %v1270 = vpop.f32.mrb[0].mxu0
      %1271 = vmatprep.mubr.bf16.mxu0 0
      %1272 = vmatmul.mubr.bf16.gmra.mrb[0].mxu0 %v1229
      %v1273 = vpop.f32.mrb[0].mxu0
      %v1274 = vadd.f32 0.0, %v1273
      %v1275 = vpop.f32.mrb[0].mxu0
      %v1276 = vpop.f32.mrb[0].mxu0
      %v1277 = vpop.f32.mrb[0].mxu0
      %1278 = vdwg.mxu0
      %v1279 = vadd.f32 %v1200, %v1266
      %v1280 = vadd.f32 %v1201, %v1269
      %v1281 = vadd.f32 %v1202, %v1274
      %v1282 = vld [vmem:[#allocation2 + $0x7] sm:$0xff]
      %v1283 = vld [vmem:[#allocation2 + $0xf] sm:$0xff]
      %v1284 = vld [vmem:[#allocation2 + $0x17] sm:$0xf]
      %v1285 = vpack.c.bf16 %v1283, %v1282
      %v1286 = vpack.c.bf16 %v1284, %v1284
      %s1287 = scalar_lea.vmem %s2, 112
      %v1288 = vld [vmem:[%s1287] sm:$0xf]
      %v1289 = vld [vmem:[%s1287 + $0x4] sm:$0xf]
      %v1290 = vld [vmem:[%s1287 + $0x8] sm:$0xf]
      %v1291 = vld [vmem:[%s1287 + $0xc] sm:$0xf]
      %v1296 = vunpack.c.l.b16 %v1288
      %v1297 = vunpack.c.l.b16 %v1289
      %v1298 = vunpack.c.l.b16 %v1290
      %v1299 = vunpack.c.l.b16 %v1291
      %v1300 = vpack.c.b16 %v1297, %v1296
      %v1301 = vpack.c.b16 %v1299, %v1298
      %v1305 = vsel %vm731, %v1285, 0
      %v1308 = vsel %vm731, %v1286, 0
      %1310 = vmatprep.subr.bf16.mxu0 0
      %1311 = vmatpush1.bf16.msra.mxu0 %v1300
      %1312 = vmatprep.subr.bf16.mxu0 0
      %1313 = vmatpush1.bf16.msra.mxu0 %v1301
      %1314 = vmatprep.subr.bf16.mxu0 0
      %1315 = vmatpush1.bf16.msra.mxu0 0
      %1316 = vmatprep.subr.bf16.mxu0 0
      %1317 = vmatpush1.bf16.msra.mxu0 0
      %1318 = vmatprep.subr.bf16.mxu0 0
      %1319 = vmatpush1.bf16.msra.mxu0 0
      %1320 = vmatprep.subr.bf16.mxu0 0
      %1321 = vmatpush1.bf16.msra.mxu0 0
      %1322 = vmatprep.subr.bf16.mxu0 0
      %1323 = vmatpush1.bf16.msra.mxu0 0
      %1324 = vmatprep.subr.bf16.mxu0 0
      %1325 = vmatpush1.bf16.msra.mxu0 0
      %1326 = vmatprep.subr.bf16.mxu0 0
      %1327 = vmatpush1.bf16.msra.mxu0 0
      %1328 = vmatprep.subr.bf16.mxu0 0
      %1329 = vmatpush1.bf16.msra.mxu0 0
      %1330 = vmatprep.subr.bf16.mxu0 0
      %1331 = vmatpush1.bf16.msra.mxu0 0
      %1332 = vmatprep.subr.bf16.mxu0 0
      %1333 = vmatpush1.bf16.msra.mxu0 0
      %1334 = vmatprep.subr.bf16.mxu0 0
      %1335 = vmatpush1.bf16.msra.mxu0 0
      %1336 = vmatprep.subr.bf16.mxu0 0
      %1337 = vmatpush1.bf16.msra.mxu0 0
      %1338 = vmatprep.subr.bf16.mxu0 0
      %1339 = vmatpush1.bf16.msra.mxu0 0
      %1340 = vmatprep.subr.bf16.mxu0 0
      %1341 = vmatpush1.bf16.msra.mxu0 0
      %1342 = vmatprep.mubr.bf16.mxu0 0
      %1343 = vmatmul.mubr.bf16.gmra.mrb[0].mxu0 %v1305
      %v1344 = vpop.f32.mrb[0].mxu0
      %v1345 = vadd.f32 0.0, %v1344
      %v1346 = vpop.f32.mrb[0].mxu0
      %v1347 = vpop.f32.mrb[0].mxu0
      %v1348 = vadd.f32 0.0, %v1347
      %v1349 = vpop.f32.mrb[0].mxu0
      %1350 = vmatprep.mubr.bf16.mxu0 0
      %1351 = vmatmul.mubr.bf16.gmra.mrb[0].mxu0 %v1308
      %v1352 = vpop.f32.mrb[0].mxu0
      %v1353 = vadd.f32 0.0, %v1352
      %v1354 = vpop.f32.mrb[0].mxu0
      %v1355 = vpop.f32.mrb[0].mxu0
      %v1356 = vpop.f32.mrb[0].mxu0
      %1357 = vdwg.mxu0
      %v1358 = vadd.f32 %v1279, %v1345
      %v1359 = vadd.f32 %v1280, %v1348
      %v1360 = vadd.f32 %v1281, %v1353
      %v1361 = vld [vmem:[#allocation2 + $0x8] sm:$0xff]
      %v1362 = vld [vmem:[#allocation2 + $0x10] sm:$0xff]
      %v1363 = vld [vmem:[#allocation2 + $0x18] sm:$0xf]
      %v1364 = vpack.c.bf16 %v1362, %v1361
      %v1365 = vpack.c.bf16 %v1363, %v1363
      %s1366 = scalar_lea.vmem %s2, 128
      %v1367 = vld [vmem:[%s1366] sm:$0xf]
      %v1368 = vld [vmem:[%s1366 + $0x4] sm:$0xf]
      %v1369 = vld [vmem:[%s1366 + $0x8] sm:$0xf]
      %v1370 = vld [vmem:[%s1366 + $0xc] sm:$0xf]
      %v1375 = vunpack.c.l.b16 %v1367
      %v1376 = vunpack.c.l.b16 %v1368
      %v1377 = vunpack.c.l.b16 %v1369
      %v1378 = vunpack.c.l.b16 %v1370
      %v1379 = vpack.c.b16 %v1376, %v1375
      %v1380 = vpack.c.b16 %v1378, %v1377
      %v1384 = vsel %vm731, %v1364, 0
      %v1387 = vsel %vm731, %v1365, 0
      %1389 = vmatprep.subr.bf16.mxu0 0
      %1390 = vmatpush1.bf16.msra.mxu0 %v1379
      %1391 = vmatprep.subr.bf16.mxu0 0
      %1392 = vmatpush1.bf16.msra.mxu0 %v1380
      %1393 = vmatprep.subr.bf16.mxu0 0
      %1394 = vmatpush1.bf16.msra.mxu0 0
      %1395 = vmatprep.subr.bf16.mxu0 0
      %1396 = vmatpush1.bf16.msra.mxu0 0
      %1397 = vmatprep.subr.bf16.mxu0 0
      %1398 = vmatpush1.bf16.msra.mxu0 0
      %1399 = vmatprep.subr.bf16.mxu0 0
      %1400 = vmatpush1.bf16.msra.mxu0 0
      %1401 = vmatprep.subr.bf16.mxu0 0
      %1402 = vmatpush1.bf16.msra.mxu0 0
      %1403 = vmatprep.subr.bf16.mxu0 0
      %1404 = vmatpush1.bf16.msra.mxu0 0
      %1405 = vmatprep.subr.bf16.mxu0 0
      %1406 = vmatpush1.bf16.msra.mxu0 0
      %1407 = vmatprep.subr.bf16.mxu0 0
      %1408 = vmatpush1.bf16.msra.mxu0 0
      %1409 = vmatprep.subr.bf16.mxu0 0
      %1410 = vmatpush1.bf16.msra.mxu0 0
      %1411 = vmatprep.subr.bf16.mxu0 0
      %1412 = vmatpush1.bf16.msra.mxu0 0
      %1413 = vmatprep.subr.bf16.mxu0 0
      %1414 = vmatpush1.bf16.msra.mxu0 0
      %1415 = vmatprep.subr.bf16.mxu0 0
      %1416 = vmatpush1.bf16.msra.mxu0 0
      %1417 = vmatprep.subr.bf16.mxu0 0
      %1418 = vmatpush1.bf16.msra.mxu0 0
      %1419 = vmatprep.subr.bf16.mxu0 0
      %1420 = vmatpush1.bf16.msra.mxu0 0
      %1421 = vmatprep.mubr.bf16.mxu0 0
      %1422 = vmatmul.mubr.bf16.gmra.mrb[0].mxu0 %v1384
      %v1423 = vpop.f32.mrb[0].mxu0
      %v1424 = vadd.f32 0.0, %v1423
      %v1425 = vpop.f32.mrb[0].mxu0
      %v1426 = vpop.f32.mrb[0].mxu0
      %v1427 = vadd.f32 0.0, %v1426
      %v1428 = vpop.f32.mrb[0].mxu0
      %1429 = vmatprep.mubr.bf16.mxu0 0
      %1430 = vmatmul.mubr.bf16.gmra.mrb[0].mxu0 %v1387
      %v1431 = vpop.f32.mrb[0].mxu0
      %v1432 = vadd.f32 0.0, %v1431
      %v1433 = vpop.f32.mrb[0].mxu0
      %v1434 = vpop.f32.mrb[0].mxu0
      %v1435 = vpop.f32.mrb[0].mxu0
      %1436 = vdwg.mxu0
      %v1437 = vadd.f32 %v1358, %v1424
      %v1438 = vadd.f32 %v1359, %v1427
      %v1439 = vadd.f32 %v1360, %v1432
      %v1440 = vld [vmem:[#allocation2 + $0x9] sm:$0xff]
      %v1441 = vld [vmem:[#allocation2 + $0x11] sm:$0xff]
      %v1442 = vld [vmem:[#allocation2 + $0x19] sm:$0xf]
      %v1443 = vpack.c.bf16 %v1441, %v1440
      %v1444 = vpack.c.bf16 %v1442, %v1442
      %s1445 = scalar_lea.vmem %s2, 144
      %v1446 = vld [vmem:[%s1445] sm:$0xf]
      %v1447 = vld [vmem:[%s1445 + $0x4] sm:$0xf]
      %v1448 = vld [vmem:[%s1445 + $0x8] sm:$0xf]
      %v1449 = vld [vmem:[%s1445 + $0xc] sm:$0xf]
      %v1454 = vunpack.c.l.b16 %v1446
      %v1455 = vunpack.c.l.b16 %v1447
      %v1456 = vunpack.c.l.b16 %v1448
      %v1457 = vunpack.c.l.b16 %v1449
      %v1458 = vpack.c.b16 %v1455, %v1454
      %v1459 = vpack.c.b16 %v1457, %v1456
      %v1463 = vsel %vm731, %v1443, 0
      %v1466 = vsel %vm731, %v1444, 0
      %1468 = vmatprep.subr.bf16.mxu0 0
      %1469 = vmatpush1.bf16.msra.mxu0 %v1458
      %1470 = vmatprep.subr.bf16.mxu0 0
      %1471 = vmatpush1.bf16.msra.mxu0 %v1459
      %1472 = vmatprep.subr.bf16.mxu0 0
      %1473 = vmatpush1.bf16.msra.mxu0 0
      %1474 = vmatprep.subr.bf16.mxu0 0
      %1475 = vmatpush1.bf16.msra.mxu0 0
      %1476 = vmatprep.subr.bf16.mxu0 0
      %1477 = vmatpush1.bf16.msra.mxu0 0
      %1478 = vmatprep.subr.bf16.mxu0 0
      %1479 = vmatpush1.bf16.msra.mxu0 0
      %1480 = vmatprep.subr.bf16.mxu0 0
      %1481 = vmatpush1.bf16.msra.mxu0 0
      %1482 = vmatprep.subr.bf16.mxu0 0
      %1483 = vmatpush1.bf16.msra.mxu0 0
      %1484 = vmatprep.subr.bf16.mxu0 0
      %1485 = vmatpush1.bf16.msra.mxu0 0
      %1486 = vmatprep.subr.bf16.mxu0 0
      %1487 = vmatpush1.bf16.msra.mxu0 0
      %1488 = vmatprep.subr.bf16.mxu0 0
      %1489 = vmatpush1.bf16.msra.mxu0 0
      %1490 = vmatprep.subr.bf16.mxu0 0
      %1491 = vmatpush1.bf16.msra.mxu0 0
      %1492 = vmatprep.subr.bf16.mxu0 0
      %1493 = vmatpush1.bf16.msra.mxu0 0
      %1494 = vmatprep.subr.bf16.mxu0 0
      %1495 = vmatpush1.bf16.msra.mxu0 0
      %1496 = vmatprep.subr.bf16.mxu0 0
      %1497 = vmatpush1.bf16.msra.mxu0 0
      %1498 = vmatprep.subr.bf16.mxu0 0
      %1499 = vmatpush1.bf16.msra.mxu0 0
      %1500 = vmatprep.mubr.bf16.mxu0 0
      %1501 = vmatmul.mubr.bf16.gmra.mrb[0].mxu0 %v1463
      %v1502 = vpop.f32.mrb[0].mxu0
      %v1503 = vadd.f32 0.0, %v1502
      %v1504 = vpop.f32.mrb[0].mxu0
      %v1505 = vpop.f32.mrb[0].mxu0
      %v1506 = vadd.f32 0.0, %v1505
      %v1507 = vpop.f32.mrb[0].mxu0
      %1508 = vmatprep.mubr.bf16.mxu0 0
      %1509 = vmatmul.mubr.bf16.gmra.mrb[0].mxu0 %v1466
      %v1510 = vpop.f32.mrb[0].mxu0
      %v1511 = vadd.f32 0.0, %v1510
      %v1512 = vpop.f32.mrb[0].mxu0
      %v1513 = vpop.f32.mrb[0].mxu0
      %v1514 = vpop.f32.mrb[0].mxu0
      %1515 = vdwg.mxu0
      %v1516 = vadd.f32 %v1437, %v1503
      %v1517 = vadd.f32 %v1438, %v1506
      %v1518 = vadd.f32 %v1439, %v1511
      %v1519 = vld [vmem:[%s3] sm:$0x1]
      %v1521 = vlaneseq
      %v1522 = vshrl.u32 %v1521, 7
      %v1523 = vsub.s32 0, %v1522
      %v1524 = vrot.slane %v1519, %v1523
      %v1526 = vadd.f32 %v1516, %v1524
      %v1527 = vadd.f32 %v1517, %v1524
      %v1528 = vadd.f32 %v1518, %v1524
      %v1529 = vmax.f32 %v1526, 0.0
      %v1530 = vmax.f32 %v1527, 0.0
      %v1531 = vmax.f32 %v1528, 0.0
      %1532 = vst.msk [vmem:[#allocation3] sm:$0xff] %vm533, %v1529
      %1533 = vst.msk [vmem:[#allocation3 + $0x8] sm:$0xff] %vm533, %v1530
      %vm1534 = vcmask 519168
      %1535 = vst.msk [vmem:[#allocation3 + $0x10] sm:$0xf] %vm1534, %v1531
      %v1536 = vld [vmem:[%s5] sm:$0x1]
      %v1537 = vld [vmem:[#allocation3] sm:$0x1]
      %v1538 = vld [vmem:[#allocation3 + $0x1] sm:$0x1]
      %v1539 = vmax.f32 %v1537, %v1538
      %v1540 = vld [vmem:[#allocation3 + $0x2] sm:$0x1]
      %v1541 = vmax.f32 %v1539, %v1540
      %v1542 = vld [vmem:[%s4] sm:$0xff]
      %v1543 = vld [vmem:[%s4 + $0x8] sm:$0xff]
      %v1544 = vld [vmem:[%s4 + $0x10] sm:$0xff]
      %v1545 = vld [vmem:[%s4 + $0x18] sm:$0xff]
      %v1546 = vld [vmem:[%s4 + $0x20] sm:$0xff]
      %v1547 = vld [vmem:[%s4 + $0x28] sm:$0xff]
      %v1548 = vld [vmem:[%s4 + $0x30] sm:$0xff]
      %v1549 = vld [vmem:[%s4 + $0x38] sm:$0xff]
      %v1551 = vsel %vm533, %v1541, 0
      %1553 = vmatprep.subr.mxu0 0.0
      %1554 = vmatpush1.msra.mxu0 %v1542
      %1555 = vmatprep.subr.mxu0 0.0
      %1556 = vmatpush1.msra.mxu0 %v1543
      %1557 = vmatprep.subr.mxu0 0.0
      %1558 = vmatpush1.msra.mxu0 %v1544
      %1559 = vmatprep.subr.mxu0 0.0
      %1560 = vmatpush1.msra.mxu0 %v1545
      %1561 = vmatprep.subr.mxu0 0.0
      %1562 = vmatpush1.msra.mxu0 %v1546
      %1563 = vmatprep.subr.mxu0 0.0
      %1564 = vmatpush1.msra.mxu0 %v1547
      %1565 = vmatprep.subr.mxu0 0.0
      %1566 = vmatpush1.msra.mxu0 %v1548
      %1567 = vmatprep.subr.mxu0 0.0
      %1568 = vmatpush1.msra.mxu0 %v1549
      %1569 = vmatprep.subr.mxu0 0.0
      %1570 = vmatpush1.msra.mxu0 0.0
      %1571 = vmatprep.subr.mxu0 0.0
      %1572 = vmatpush1.msra.mxu0 0.0
      %1573 = vmatprep.subr.mxu0 0.0
      %1574 = vmatpush1.msra.mxu0 0.0
      %1575 = vmatprep.subr.mxu0 0.0
      %1576 = vmatpush1.msra.mxu0 0.0
      %1577 = vmatprep.subr.mxu0 0.0
      %1578 = vmatpush1.msra.mxu0 0.0
      %1579 = vmatprep.subr.mxu0 0.0
      %1580 = vmatpush1.msra.mxu0 0.0
      %1581 = vmatprep.subr.mxu0 0.0
      %1582 = vmatpush1.msra.mxu0 0.0
      %1583 = vmatprep.subr.mxu0 0.0
      %1584 = vmatpush1.msra.mxu0 0.0
      %1585 = vmatprep.subr.mxu0 0.0
      %1586 = vmatpush1.msra.mxu0 0.0
      %1587 = vmatprep.subr.mxu0 0.0
      %1588 = vmatpush1.msra.mxu0 0.0
      %1589 = vmatprep.subr.mxu0 0.0
      %1590 = vmatpush1.msra.mxu0 0.0
      %1591 = vmatprep.subr.mxu0 0.0
      %1592 = vmatpush1.msra.mxu0 0.0
      %1593 = vmatprep.subr.mxu0 0.0
      %1594 = vmatpush1.msra.mxu0 0.0
      %1595 = vmatprep.subr.mxu0 0.0
      %1596 = vmatpush1.msra.mxu0 0.0
      %1597 = vmatprep.subr.mxu0 0.0
      %1598 = vmatpush1.msra.mxu0 0.0
      %1599 = vmatprep.subr.mxu0 0.0
      %1600 = vmatpush1.msra.mxu0 0.0
      %1601 = vmatprep.subr.mxu0 0.0
      %1602 = vmatpush1.msra.mxu0 0.0
      %1603 = vmatprep.subr.mxu0 0.0
      %1604 = vmatpush1.msra.mxu0 0.0
      %1605 = vmatprep.subr.mxu0 0.0
      %1606 = vmatpush1.msra.mxu0 0.0
      %1607 = vmatprep.subr.mxu0 0.0
      %1608 = vmatpush1.msra.mxu0 0.0
      %1609 = vmatprep.subr.mxu0 0.0
      %1610 = vmatpush1.msra.mxu0 0.0
      %1611 = vmatprep.subr.mxu0 0.0
      %1612 = vmatpush1.msra.mxu0 0.0
      %1613 = vmatprep.subr.mxu0 0.0
      %1614 = vmatpush1.msra.mxu0 0.0
      %1615 = vmatprep.subr.mxu0 0.0
      %1616 = vmatpush1.msra.mxu0 0.0
      %1617 = vmatprep.mubr.f32.mxu0 0.0
      %1618 = vmatmul.mubr.f32.gmra.mrb[0].mxu0 %v1551
      %v1619 = vpop.f32.mrb[0].mxu0
      %v1620 = vadd.f32 0.0, %v1619
      %v1621 = vpop.f32.mrb[0].mxu0
      %1622 = vdwg.mxu0
      %v1623 = vadd.f32 %v1536, %v1620
      %v1624 = vld [vmem:[#allocation3 + $0x3] sm:$0x1]
      %v1625 = vld [vmem:[#allocation3 + $0x4] sm:$0x1]
      %v1626 = vmax.f32 %v1624, %v1625
      %v1627 = vld [vmem:[#allocation3 + $0x5] sm:$0x1]
      %v1628 = vmax.f32 %v1626, %v1627
      %s1629 = scalar_lea.vmem %s4, 64
      %v1630 = vld [vmem:[%s1629] sm:$0xff]
      %v1631 = vld [vmem:[%s1629 + $0x8] sm:$0xff]
      %v1632 = vld [vmem:[%s1629 + $0x10] sm:$0xff]
      %v1633 = vld [vmem:[%s1629 + $0x18] sm:$0xff]
      %v1634 = vld [vmem:[%s1629 + $0x20] sm:$0xff]
      %v1635 = vld [vmem:[%s1629 + $0x28] sm:$0xff]
      %v1636 = vld [vmem:[%s1629 + $0x30] sm:$0xff]
      %v1637 = vld [vmem:[%s1629 + $0x38] sm:$0xff]
      %v1639 = vsel %vm533, %v1628, 0
      %1641 = vmatprep.subr.mxu0 0.0
      %1642 = vmatpush1.msra.mxu0 %v1630
      %1643 = vmatprep.subr.mxu0 0.0
      %1644 = vmatpush1.msra.mxu0 %v1631
      %1645 = vmatprep.subr.mxu0 0.0
      %1646 = vmatpush1.msra.mxu0 %v1632
      %1647 = vmatprep.subr.mxu0 0.0
      %1648 = vmatpush1.msra.mxu0 %v1633
      %1649 = vmatprep.subr.mxu0 0.0
      %1650 = vmatpush1.msra.mxu0 %v1634
      %1651 = vmatprep.subr.mxu0 0.0
      %1652 = vmatpush1.msra.mxu0 %v1635
      %1653 = vmatprep.subr.mxu0 0.0
      %1654 = vmatpush1.msra.mxu0 %v1636
      %1655 = vmatprep.subr.mxu0 0.0
      %1656 = vmatpush1.msra.mxu0 %v1637
      %1657 = vmatprep.subr.mxu0 0.0
      %1658 = vmatpush1.msra.mxu0 0.0
      %1659 = vmatprep.subr.mxu0 0.0
      %1660 = vmatpush1.msra.mxu0 0.0
      %1661 = vmatprep.subr.mxu0 0.0
      %1662 = vmatpush1.msra.mxu0 0.0
      %1663 = vmatprep.subr.mxu0 0.0
      %1664 = vmatpush1.msra.mxu0 0.0
      %1665 = vmatprep.subr.mxu0 0.0
      %1666 = vmatpush1.msra.mxu0 0.0
      %1667 = vmatprep.subr.mxu0 0.0
      %1668 = vmatpush1.msra.mxu0 0.0
      %1669 = vmatprep.subr.mxu0 0.0
      %1670 = vmatpush1.msra.mxu0 0.0
      %1671 = vmatprep.subr.mxu0 0.0
      %1672 = vmatpush1.msra.mxu0 0.0
      %1673 = vmatprep.subr.mxu0 0.0
      %1674 = vmatpush1.msra.mxu0 0.0
      %1675 = vmatprep.subr.mxu0 0.0
      %1676 = vmatpush1.msra.mxu0 0.0
      %1677 = vmatprep.subr.mxu0 0.0
      %1678 = vmatpush1.msra.mxu0 0.0
      %1679 = vmatprep.subr.mxu0 0.0
      %1680 = vmatpush1.msra.mxu0 0.0
      %1681 = vmatprep.subr.mxu0 0.0
      %1682 = vmatpush1.msra.mxu0 0.0
      %1683 = vmatprep.subr.mxu0 0.0
      %1684 = vmatpush1.msra.mxu0 0.0
      %1685 = vmatprep.subr.mxu0 0.0
      %1686 = vmatpush1.msra.mxu0 0.0
      %1687 = vmatprep.subr.mxu0 0.0
      %1688 = vmatpush1.msra.mxu0 0.0
      %1689 = vmatprep.subr.mxu0 0.0
      %1690 = vmatpush1.msra.mxu0 0.0
      %1691 = vmatprep.subr.mxu0 0.0
      %1692 = vmatpush1.msra.mxu0 0.0
      %1693 = vmatprep.subr.mxu0 0.0
      %1694 = vmatpush1.msra.mxu0 0.0
      %1695 = vmatprep.subr.mxu0 0.0
      %1696 = vmatpush1.msra.mxu0 0.0
      %1697 = vmatprep.subr.mxu0 0.0
      %1698 = vmatpush1.msra.mxu0 0.0
      %1699 = vmatprep.subr.mxu0 0.0
      %1700 = vmatpush1.msra.mxu0 0.0
      %1701 = vmatprep.subr.mxu0 0.0
      %1702 = vmatpush1.msra.mxu0 0.0
      %1703 = vmatprep.subr.mxu0 0.0
      %1704 = vmatpush1.msra.mxu0 0.0
      %1705 = vmatprep.mubr.f32.mxu0 0.0
      %1706 = vmatmul.mubr.f32.gmra.mrb[0].mxu0 %v1639
      %v1707 = vpop.f32.mrb[0].mxu0
      %v1708 = vadd.f32 0.0, %v1707
      %v1709 = vpop.f32.mrb[0].mxu0
      %1710 = vdwg.mxu0
      %v1711 = vadd.f32 %v1623, %v1708
      %v1712 = vld [vmem:[#allocation3 + $0x6] sm:$0x1]
      %v1713 = vld [vmem:[#allocation3 + $0x7] sm:$0x1]
      %v1714 = vmax.f32 %v1712, %v1713
      %v1715 = vld [vmem:[#allocation3 + $0x8] sm:$0x1]
      %v1716 = vmax.f32 %v1714, %v1715
      %s1717 = scalar_lea.vmem %s4, 128
      %v1718 = vld [vmem:[%s1717] sm:$0xff]
      %v1719 = vld [vmem:[%s1717 + $0x8] sm:$0xff]
      %v1720 = vld [vmem:[%s1717 + $0x10] sm:$0xff]
      %v1721 = vld [vmem:[%s1717 + $0x18] sm:$0xff]
      %v1722 = vld [vmem:[%s1717 + $0x20] sm:$0xff]
      %v1723 = vld [vmem:[%s1717 + $0x28] sm:$0xff]
      %v1724 = vld [vmem:[%s1717 + $0x30] sm:$0xff]
      %v1725 = vld [vmem:[%s1717 + $0x38] sm:$0xff]
      %v1727 = vsel %vm533, %v1716, 0
      %1729 = vmatprep.subr.mxu0 0.0
      %1730 = vmatpush1.msra.mxu0 %v1718
      %1731 = vmatprep.subr.mxu0 0.0
      %1732 = vmatpush1.msra.mxu0 %v1719
      %1733 = vmatprep.subr.mxu0 0.0
      %1734 = vmatpush1.msra.mxu0 %v1720
      %1735 = vmatprep.subr.mxu0 0.0
      %1736 = vmatpush1.msra.mxu0 %v1721
      %1737 = vmatprep.subr.mxu0 0.0
      %1738 = vmatpush1.msra.mxu0 %v1722
      %1739 = vmatprep.subr.mxu0 0.0
      %1740 = vmatpush1.msra.mxu0 %v1723
      %1741 = vmatprep.subr.mxu0 0.0
      %1742 = vmatpush1.msra.mxu0 %v1724
      %1743 = vmatprep.subr.mxu0 0.0
      %1744 = vmatpush1.msra.mxu0 %v1725
      %1745 = vmatprep.subr.mxu0 0.0
      %1746 = vmatpush1.msra.mxu0 0.0
      %1747 = vmatprep.subr.mxu0 0.0
      %1748 = vmatpush1.msra.mxu0 0.0
      %1749 = vmatprep.subr.mxu0 0.0
      %1750 = vmatpush1.msra.mxu0 0.0
      %1751 = vmatprep.subr.mxu0 0.0
      %1752 = vmatpush1.msra.mxu0 0.0
      %1753 = vmatprep.subr.mxu0 0.0
      %1754 = vmatpush1.msra.mxu0 0.0
      %1755 = vmatprep.subr.mxu0 0.0
      %1756 = vmatpush1.msra.mxu0 0.0
      %1757 = vmatprep.subr.mxu0 0.0
      %1758 = vmatpush1.msra.mxu0 0.0
      %1759 = vmatprep.subr.mxu0 0.0
      %1760 = vmatpush1.msra.mxu0 0.0
      %1761 = vmatprep.subr.mxu0 0.0
      %1762 = vmatpush1.msra.mxu0 0.0
      %1763 = vmatprep.subr.mxu0 0.0
      %1764 = vmatpush1.msra.mxu0 0.0
      %1765 = vmatprep.subr.mxu0 0.0
      %1766 = vmatpush1.msra.mxu0 0.0
      %1767 = vmatprep.subr.mxu0 0.0
      %1768 = vmatpush1.msra.mxu0 0.0
      %1769 = vmatprep.subr.mxu0 0.0
      %1770 = vmatpush1.msra.mxu0 0.0
      %1771 = vmatprep.subr.mxu0 0.0
      %1772 = vmatpush1.msra.mxu0 0.0
      %1773 = vmatprep.subr.mxu0 0.0
      %1774 = vmatpush1.msra.mxu0 0.0
      %1775 = vmatprep.subr.mxu0 0.0
      %1776 = vmatpush1.msra.mxu0 0.0
      %1777 = vmatprep.subr.mxu0 0.0
      %1778 = vmatpush1.msra.mxu0 0.0
      %1779 = vmatprep.subr.mxu0 0.0
      %1780 = vmatpush1.msra.mxu0 0.0
      %1781 = vmatprep.subr.mxu0 0.0
      %1782 = vmatpush1.msra.mxu0 0.0
      %1783 = vmatprep.subr.mxu0 0.0
      %1784 = vmatpush1.msra.mxu0 0.0
      %1785 = vmatprep.subr.mxu0 0.0
      %1786 = vmatpush1.msra.mxu0 0.0
      %1787 = vmatprep.subr.mxu0 0.0
      %1788 = vmatpush1.msra.mxu0 0.0
      %1789 = vmatprep.subr.mxu0 0.0
      %1790 = vmatpush1.msra.mxu0 0.0
      %1791 = vmatprep.subr.mxu0 0.0
      %1792 = vmatpush1.msra.mxu0 0.0
      %1793 = vmatprep.mubr.f32.mxu0 0.0
      %1794 = vmatmul.mubr.f32.gmra.mrb[0].mxu0 %v1727
      %v1795 = vpop.f32.mrb[0].mxu0
      %v1796 = vadd.f32 0.0, %v1795
      %v1797 = vpop.f32.mrb[0].mxu0
      %1798 = vdwg.mxu0
      %v1799 = vadd.f32 %v1711, %v1796
      %v1800 = vld [vmem:[#allocation3 + $0x9] sm:$0x1]
      %v1801 = vld [vmem:[#allocation3 + $0xa] sm:$0x1]
      %v1802 = vmax.f32 %v1800, %v1801
      %v1803 = vld [vmem:[#allocation3 + $0xb] sm:$0x1]
      %v1804 = vmax.f32 %v1802, %v1803
      %s1805 = scalar_lea.vmem %s4, 192
      %v1806 = vld [vmem:[%s1805] sm:$0xff]
      %v1807 = vld [vmem:[%s1805 + $0x8] sm:$0xff]
      %v1808 = vld [vmem:[%s1805 + $0x10] sm:$0xff]
      %v1809 = vld [vmem:[%s1805 + $0x18] sm:$0xff]
      %v1810 = vld [vmem:[%s1805 + $0x20] sm:$0xff]
      %v1811 = vld [vmem:[%s1805 + $0x28] sm:$0xff]
      %v1812 = vld [vmem:[%s1805 + $0x30] sm:$0xff]
      %v1813 = vld [vmem:[%s1805 + $0x38] sm:$0xff]
      %v1815 = vsel %vm533, %v1804, 0
      %1817 = vmatprep.subr.mxu0 0.0
      %1818 = vmatpush1.msra.mxu0 %v1806
      %1819 = vmatprep.subr.mxu0 0.0
      %1820 = vmatpush1.msra.mxu0 %v1807
      %1821 = vmatprep.subr.mxu0 0.0
      %1822 = vmatpush1.msra.mxu0 %v1808
      %1823 = vmatprep.subr.mxu0 0.0
      %1824 = vmatpush1.msra.mxu0 %v1809
      %1825 = vmatprep.subr.mxu0 0.0
      %1826 = vmatpush1.msra.mxu0 %v1810
      %1827 = vmatprep.subr.mxu0 0.0
      %1828 = vmatpush1.msra.mxu0 %v1811
      %1829 = vmatprep.subr.mxu0 0.0
      %1830 = vmatpush1.msra.mxu0 %v1812
      %1831 = vmatprep.subr.mxu0 0.0
      %1832 = vmatpush1.msra.mxu0 %v1813
      %1833 = vmatprep.subr.mxu0 0.0
      %1834 = vmatpush1.msra.mxu0 0.0
      %1835 = vmatprep.subr.mxu0 0.0
      %1836 = vmatpush1.msra.mxu0 0.0
      %1837 = vmatprep.subr.mxu0 0.0
      %1838 = vmatpush1.msra.mxu0 0.0
      %1839 = vmatprep.subr.mxu0 0.0
      %1840 = vmatpush1.msra.mxu0 0.0
      %1841 = vmatprep.subr.mxu0 0.0
      %1842 = vmatpush1.msra.mxu0 0.0
      %1843 = vmatprep.subr.mxu0 0.0
      %1844 = vmatpush1.msra.mxu0 0.0
      %1845 = vmatprep.subr.mxu0 0.0
      %1846 = vmatpush1.msra.mxu0 0.0
      %1847 = vmatprep.subr.mxu0 0.0
      %1848 = vmatpush1.msra.mxu0 0.0
      %1849 = vmatprep.subr.mxu0 0.0
      %1850 = vmatpush1.msra.mxu0 0.0
      %1851 = vmatprep.subr.mxu0 0.0
      %1852 = vmatpush1.msra.mxu0 0.0
      %1853 = vmatprep.subr.mxu0 0.0
      %1854 = vmatpush1.msra.mxu0 0.0
      %1855 = vmatprep.subr.mxu0 0.0
      %1856 = vmatpush1.msra.mxu0 0.0
      %1857 = vmatprep.subr.mxu0 0.0
      %1858 = vmatpush1.msra.mxu0 0.0
      %1859 = vmatprep.subr.mxu0 0.0
      %1860 = vmatpush1.msra.mxu0 0.0
      %1861 = vmatprep.subr.mxu0 0.0
      %1862 = vmatpush1.msra.mxu0 0.0
      %1863 = vmatprep.subr.mxu0 0.0
      %1864 = vmatpush1.msra.mxu0 0.0
      %1865 = vmatprep.subr.mxu0 0.0
      %1866 = vmatpush1.msra.mxu0 0.0
      %1867 = vmatprep.subr.mxu0 0.0
      %1868 = vmatpush1.msra.mxu0 0.0
      %1869 = vmatprep.subr.mxu0 0.0
      %1870 = vmatpush1.msra.mxu0 0.0
      %1871 = vmatprep.subr.mxu0 0.0
      %1872 = vmatpush1.msra.mxu0 0.0
      %1873 = vmatprep.subr.mxu0 0.0
      %1874 = vmatpush1.msra.mxu0 0.0
      %1875 = vmatprep.subr.mxu0 0.0
      %1876 = vmatpush1.msra.mxu0 0.0
      %1877 = vmatprep.subr.mxu0 0.0
      %1878 = vmatpush1.msra.mxu0 0.0
      %1879 = vmatprep.subr.mxu0 0.0
      %1880 = vmatpush1.msra.mxu0 0.0
      %1881 = vmatprep.mubr.f32.mxu0 0.0
      %1882 = vmatmul.mubr.f32.gmra.mrb[0].mxu0 %v1815
      %v1883 = vpop.f32.mrb[0].mxu0
      %v1884 = vadd.f32 0.0, %v1883
      %v1885 = vpop.f32.mrb[0].mxu0
      %1886 = vdwg.mxu0
      %v1887 = vadd.f32 %v1799, %v1884
      %v1888 = vld [vmem:[#allocation3 + $0xc] sm:$0x1]
      %v1889 = vld [vmem:[#allocation3 + $0xd] sm:$0x1]
      %v1890 = vmax.f32 %v1888, %v1889
      %v1891 = vld [vmem:[#allocation3 + $0xe] sm:$0x1]
      %v1892 = vmax.f32 %v1890, %v1891
      %s1893 = scalar_lea.vmem %s4, 256
      %v1894 = vld [vmem:[%s1893] sm:$0xff]
      %v1895 = vld [vmem:[%s1893 + $0x8] sm:$0xff]
      %v1896 = vld [vmem:[%s1893 + $0x10] sm:$0xff]
      %v1897 = vld [vmem:[%s1893 + $0x18] sm:$0xff]
      %v1898 = vld [vmem:[%s1893 + $0x20] sm:$0xff]
      %v1899 = vld [vmem:[%s1893 + $0x28] sm:$0xff]
      %v1900 = vld [vmem:[%s1893 + $0x30] sm:$0xff]
      %v1901 = vld [vmem:[%s1893 + $0x38] sm:$0xff]
      %v1903 = vsel %vm533, %v1892, 0
      %1905 = vmatprep.subr.mxu0 0.0
      %1906 = vmatpush1.msra.mxu0 %v1894
      %1907 = vmatprep.subr.mxu0 0.0
      %1908 = vmatpush1.msra.mxu0 %v1895
      %1909 = vmatprep.subr.mxu0 0.0
      %1910 = vmatpush1.msra.mxu0 %v1896
      %1911 = vmatprep.subr.mxu0 0.0
      %1912 = vmatpush1.msra.mxu0 %v1897
      %1913 = vmatprep.subr.mxu0 0.0
      %1914 = vmatpush1.msra.mxu0 %v1898
      %1915 = vmatprep.subr.mxu0 0.0
      %1916 = vmatpush1.msra.mxu0 %v1899
      %1917 = vmatprep.subr.mxu0 0.0
      %1918 = vmatpush1.msra.mxu0 %v1900
      %1919 = vmatprep.subr.mxu0 0.0
      %1920 = vmatpush1.msra.mxu0 %v1901
      %1921 = vmatprep.subr.mxu0 0.0
      %1922 = vmatpush1.msra.mxu0 0.0
      %1923 = vmatprep.subr.mxu0 0.0
      %1924 = vmatpush1.msra.mxu0 0.0
      %1925 = vmatprep.subr.mxu0 0.0
      %1926 = vmatpush1.msra.mxu0 0.0
      %1927 = vmatprep.subr.mxu0 0.0
      %1928 = vmatpush1.msra.mxu0 0.0
      %1929 = vmatprep.subr.mxu0 0.0
      %1930 = vmatpush1.msra.mxu0 0.0
      %1931 = vmatprep.subr.mxu0 0.0
      %1932 = vmatpush1.msra.mxu0 0.0
      %1933 = vmatprep.subr.mxu0 0.0
      %1934 = vmatpush1.msra.mxu0 0.0
      %1935 = vmatprep.subr.mxu0 0.0
      %1936 = vmatpush1.msra.mxu0 0.0
      %1937 = vmatprep.subr.mxu0 0.0
      %1938 = vmatpush1.msra.mxu0 0.0
      %1939 = vmatprep.subr.mxu0 0.0
      %1940 = vmatpush1.msra.mxu0 0.0
      %1941 = vmatprep.subr.mxu0 0.0
      %1942 = vmatpush1.msra.mxu0 0.0
      %1943 = vmatprep.subr.mxu0 0.0
      %1944 = vmatpush1.msra.mxu0 0.0
      %1945 = vmatprep.subr.mxu0 0.0
      %1946 = vmatpush1.msra.mxu0 0.0
      %1947 = vmatprep.subr.mxu0 0.0
      %1948 = vmatpush1.msra.mxu0 0.0
      %1949 = vmatprep.subr.mxu0 0.0
      %1950 = vmatpush1.msra.mxu0 0.0
      %1951 = vmatprep.subr.mxu0 0.0
      %1952 = vmatpush1.msra.mxu0 0.0
      %1953 = vmatprep.subr.mxu0 0.0
      %1954 = vmatpush1.msra.mxu0 0.0
      %1955 = vmatprep.subr.mxu0 0.0
      %1956 = vmatpush1.msra.mxu0 0.0
      %1957 = vmatprep.subr.mxu0 0.0
      %1958 = vmatpush1.msra.mxu0 0.0
      %1959 = vmatprep.subr.mxu0 0.0
      %1960 = vmatpush1.msra.mxu0 0.0
      %1961 = vmatprep.subr.mxu0 0.0
      %1962 = vmatpush1.msra.mxu0 0.0
      %1963 = vmatprep.subr.mxu0 0.0
      %1964 = vmatpush1.msra.mxu0 0.0
      %1965 = vmatprep.subr.mxu0 0.0
      %1966 = vmatpush1.msra.mxu0 0.0
      %1967 = vmatprep.subr.mxu0 0.0
      %1968 = vmatpush1.msra.mxu0 0.0
      %1969 = vmatprep.mubr.f32.mxu0 0.0
      %1970 = vmatmul.mubr.f32.gmra.mrb[0].mxu0 %v1903
      %v1971 = vpop.f32.mrb[0].mxu0
      %v1972 = vadd.f32 0.0, %v1971
      %v1973 = vpop.f32.mrb[0].mxu0
      %1974 = vdwg.mxu0
      %v1975 = vadd.f32 %v1887, %v1972
      %v1976 = vld [vmem:[#allocation3 + $0xf] sm:$0x1]
      %v1977 = vld [vmem:[#allocation3 + $0x10] sm:$0x1]
      %v1978 = vmax.f32 %v1976, %v1977
      %v1979 = vld [vmem:[#allocation3 + $0x11] sm:$0x1]
      %v1980 = vmax.f32 %v1978, %v1979
      %s1981 = scalar_lea.vmem %s4, 320
      %v1982 = vld [vmem:[%s1981] sm:$0xff]
      %v1983 = vld [vmem:[%s1981 + $0x8] sm:$0xff]
      %v1984 = vld [vmem:[%s1981 + $0x10] sm:$0xff]
      %v1985 = vld [vmem:[%s1981 + $0x18] sm:$0xff]
      %v1986 = vld [vmem:[%s1981 + $0x20] sm:$0xff]
      %v1987 = vld [vmem:[%s1981 + $0x28] sm:$0xff]
      %v1988 = vld [vmem:[%s1981 + $0x30] sm:$0xff]
      %v1989 = vld [vmem:[%s1981 + $0x38] sm:$0xff]
      %v1991 = vsel %vm533, %v1980, 0
      %1993 = vmatprep.subr.mxu0 0.0
      %1994 = vmatpush1.msra.mxu0 %v1982
      %1995 = vmatprep.subr.mxu0 0.0
      %1996 = vmatpush1.msra.mxu0 %v1983
      %1997 = vmatprep.subr.mxu0 0.0
      %1998 = vmatpush1.msra.mxu0 %v1984
      %1999 = vmatprep.subr.mxu0 0.0
      %2000 = vmatpush1.msra.mxu0 %v1985
      %2001 = vmatprep.subr.mxu0 0.0
      %2002 = vmatpush1.msra.mxu0 %v1986
      %2003 = vmatprep.subr.mxu0 0.0
      %2004 = vmatpush1.msra.mxu0 %v1987
      %2005 = vmatprep.subr.mxu0 0.0
      %2006 = vmatpush1.msra.mxu0 %v1988
      %2007 = vmatprep.subr.mxu0 0.0
      %2008 = vmatpush1.msra.mxu0 %v1989
      %2009 = vmatprep.subr.mxu0 0.0
      %2010 = vmatpush1.msra.mxu0 0.0
      %2011 = vmatprep.subr.mxu0 0.0
      %2012 = vmatpush1.msra.mxu0 0.0
      %2013 = vmatprep.subr.mxu0 0.0
      %2014 = vmatpush1.msra.mxu0 0.0
      %2015 = vmatprep.subr.mxu0 0.0
      %2016 = vmatpush1.msra.mxu0 0.0
      %2017 = vmatprep.subr.mxu0 0.0
      %2018 = vmatpush1.msra.mxu0 0.0
      %2019 = vmatprep.subr.mxu0 0.0
      %2020 = vmatpush1.msra.mxu0 0.0
      %2021 = vmatprep.subr.mxu0 0.0
      %2022 = vmatpush1.msra.mxu0 0.0
      %2023 = vmatprep.subr.mxu0 0.0
      %2024 = vmatpush1.msra.mxu0 0.0
      %2025 = vmatprep.subr.mxu0 0.0
      %2026 = vmatpush1.msra.mxu0 0.0
      %2027 = vmatprep.subr.mxu0 0.0
      %2028 = vmatpush1.msra.mxu0 0.0
      %2029 = vmatprep.subr.mxu0 0.0
      %2030 = vmatpush1.msra.mxu0 0.0
      %2031 = vmatprep.subr.mxu0 0.0
      %2032 = vmatpush1.msra.mxu0 0.0
      %2033 = vmatprep.subr.mxu0 0.0
      %2034 = vmatpush1.msra.mxu0 0.0
      %2035 = vmatprep.subr.mxu0 0.0
      %2036 = vmatpush1.msra.mxu0 0.0
      %2037 = vmatprep.subr.mxu0 0.0
      %2038 = vmatpush1.msra.mxu0 0.0
      %2039 = vmatprep.subr.mxu0 0.0
      %2040 = vmatpush1.msra.mxu0 0.0
      %2041 = vmatprep.subr.mxu0 0.0
      %2042 = vmatpush1.msra.mxu0 0.0
      %2043 = vmatprep.subr.mxu0 0.0
      %2044 = vmatpush1.msra.mxu0 0.0
      %2045 = vmatprep.subr.mxu0 0.0
      %2046 = vmatpush1.msra.mxu0 0.0
      %2047 = vmatprep.subr.mxu0 0.0
      %2048 = vmatpush1.msra.mxu0 0.0
      %2049 = vmatprep.subr.mxu0 0.0
      %2050 = vmatpush1.msra.mxu0 0.0
      %2051 = vmatprep.subr.mxu0 0.0
      %2052 = vmatpush1.msra.mxu0 0.0
      %2053 = vmatprep.subr.mxu0 0.0
      %2054 = vmatpush1.msra.mxu0 0.0
      %2055 = vmatprep.subr.mxu0 0.0
      %2056 = vmatpush1.msra.mxu0 0.0
      %2057 = vmatprep.mubr.f32.mxu0 0.0
      %2058 = vmatmul.mubr.f32.gmra.mrb[0].mxu0 %v1991
      %v2059 = vpop.f32.mrb[0].mxu0
      %v2060 = vadd.f32 0.0, %v2059
      %v2061 = vpop.f32.mrb[0].mxu0
      %2062 = vdwg.mxu0
      %v2063 = vadd.f32 %v1975, %v2060
      %v2064 = vld [vmem:[%s6] sm:$0x1]
      %v2065 = vmul.f32 %v2063, %v2064
      %vm2066 = vcmask 122880
      %v2067 = vsel %vm2066, %v2065, 0.0
      %2068 = vadd.xlane.f32.xlu0 %v2067
      %v2069 = vpop.xlane.xlu0 %2068
      %v2070 = vld [vmem:[#allocation4] sm:$0x1]
      %v2071 = vadd.f32 %v2069, %v2070
      %v2072 = vxor.u32 %v2071, 2147483648
      %v2073 = vmul.f32 %v2072, 1.442695
      %v2074 = vpow.pop %v2073
      %v2075 = vadd.f32 %v2074, 1.0
      %v2076 = vrcp.pop %v2075
      %v2077 = vmul.f32 1.0, %v2076
      %vm2078 = vcmask 0
      %2079 = vst.msk [vmem:[%s303] sm:$0x1] %vm2078, %v2077
      %p2080 = scmp.lt.s32.totalorder %s21, 1
      %s2081 = scalar_select %p2080, %s21, 1
      %s2082 = scalar_lea.vmem %s8, %s2081
      // Predicated region
      $region53: #{hocnnlb_forward.1} parent=51 // pred_check
        %p2083 = pneg %p212
      $region54: #{hocnnlb_forward.1} parent=51 // pred_check_branch
        %2085 = sbr.rel (%p2083) target = $region56
      $region55: #{hocnnlb_forward.1} parent=51 // pred_region
        _
      $region56: #{hocnnlb_forward.1} parent=51 // pred_fallthru
        _
    $region52: #{hocnnlb_forward.1} parent=5 // pred_fallthru
      _
    %p2086 = scmp.le.s32.totalorder 2, %s16
    // Predicated region
    $region57: #{hocnnlb_forward.1} parent=5 // pred_check
      %p2087 = pneg %p2086
    $region58: #{hocnnlb_forward.1} parent=5 // pred_check_branch
      %2089 = sbr.rel (%p2087) target = $region60
    $region59: #{hocnnlb_forward.1} parent=5 // pred_region
      %s2090 = ssub.s32 %s16, 2
      // Predicated region
      $region61: #{hocnnlb_forward.1} parent=59 // pred_check
        %p2091 = pneg %p218
      $region62: #{hocnnlb_forward.1} parent=59 // pred_check_branch
        %2093 = sbr.rel (%p2091) target = $region64
      $region63: #{hocnnlb_forward.1} parent=59 // pred_region
        %p2094 = scmp.lt.s32.totalorder %s22, 1
        %s2095 = scalar_select %p2094, %s22, 1
        %s2096 = scalar_lea.vmem %s8, %s2095
      $region64: #{hocnnlb_forward.1} parent=59 // pred_fallthru
        _
    $region60: #{hocnnlb_forward.1} parent=5 // pred_fallthru
      _
  $region6: #{hocnnlb_forward.1} parent=0 // loop_footer
    %s20 = sadd.s32 1, %s16
  $region7: #{hocnnlb_forward.1} parent=0 // loop_footer_branch
    %15 = sbr.rel target = $region3
  $region8: #{hocnnlb_forward.1} parent=0 // loop_exit
    _

</llo_original>
